<compile_context>
chip_gen: v6e
topology: v6e:2x2x1
jax: 0.10.0
libtpu: 0.0.40
codegen_flags: <defaults>
</compile_context>

<pallas_src>
import functools

import jax
import jax.numpy as jnp
from jax.experimental import pallas as pl
from jax.experimental.pallas import tpu as pltpu

EPS = 1e-3  # BatchNorm2d(eps=0.001)


def bn_relu_kernel(x_ref, p_ref, o_ref, *, inv_n):
    # x_ref: (CB, LP) ; p_ref: (CB, 2) with col0=gamma, col1=beta ; o_ref: (CB, LP)
    x = x_ref[...].astype(jnp.float32)
    lp = x.shape[1]

    # Lane-axis reductions on the MXU (different VLIW slot than the VPU work).
    # Zero padding contributes nothing to either sum; divide by the true n.
    ones = jnp.ones((lp, 128), jnp.float32)
    s = jnp.dot(x, ones, preferred_element_type=jnp.float32,
                precision=jax.lax.Precision.HIGHEST)[:, 0:1]        # (CB, 1)
    sq = jnp.dot(x * x, ones, preferred_element_type=jnp.float32,
                 precision=jax.lax.Precision.HIGHEST)[:, 0:1]       # (CB, 1)

    mean = s * inv_n
    var = sq * inv_n - mean * mean           # biased variance (training mode)
    inv_std = jax.lax.rsqrt(var + EPS)

    p = p_ref[...]
    gamma = p[:, 0:1]
    beta = p[:, 1:2]
    scale = gamma * inv_std                  # per-channel fused scale
    shift = beta - mean * scale              # per-channel fused shift

    # Big-tensor elementwise pass: mul + add + max per element.
    y = x * scale + shift
    o_ref[...] = jnp.maximum(y, 0.0).astype(o_ref.dtype)


def batchnorm_relu(x_nchw, weight, bias):
    """x_nchw: (N, C, H, W); weight/bias: (C,). Returns (N, C, H, W)."""
    N, C, H, W = x_nchw.shape
    L = N * H * W
    LP = pl.cdiv(L, 128) * 128               # lane-dense padded width

    # Channel-major slab. For N == 1 this is a pure reshape (no data movement).
    if N == 1:
        x2d = x_nchw.reshape(C, L)
    else:
        # TODO(synk): for large N, fold this transpose into the kernel with a
        # batch grid axis + VMEM stats accumulator instead of an XLA transpose.
        x2d = jnp.transpose(x_nchw, (1, 0, 2, 3)).reshape(C, L)
    if LP != L:
        x2d = jnp.pad(x2d, ((0, 0), (0, LP - L)))   # zeros don't perturb sums

    # Single fused per-channel parameter array: one DMA instead of two.
    params = jnp.stack(
        [weight.astype(jnp.float32), bias.astype(jnp.float32)], axis=1)  # (C, 2)

    # Channel-block grid: blocks are independent (per-channel statistics), so
    # mark the axis "parallel" — on v7x the two TensorCores split the channels.
    n_cblk = 2 if (C % 16 == 0) else 1
    cb = C // n_cblk

    kernel = functools.partial(bn_relu_kernel, inv_n=1.0 / L)

    out2d = pl.pallas_call(
        kernel,
        out_shape=jax.ShapeDtypeStruct((C, LP), x_nchw.dtype),
        grid_spec=pltpu.PrefetchScalarGridSpec(
            num_scalar_prefetch=0,
            grid=(n_cblk,),
            in_specs=[
                pl.BlockSpec((cb, LP), lambda c: (c, 0)),
                pl.BlockSpec((cb, 2), lambda c: (c, 0)),
            ],
            out_specs=pl.BlockSpec((cb, LP), lambda c: (c, 0)),
        ),
        compiler_params=pltpu.CompilerParams(
            dimension_semantics=("parallel",),
        ),
    )(x2d, params)

    out2d = out2d[:, :L]
    if N == 1:
        return out2d.reshape(N, C, H, W)
    return jnp.transpose(out2d.reshape(C, N, H, W), (1, 0, 2, 3))


def reference(x_nchw, weight, bias):
    x = x_nchw.astype(jnp.float32)
    mean = jnp.mean(x, axis=(0, 2, 3), keepdims=True)
    var = jnp.mean((x - mean) ** 2, axis=(0, 2, 3), keepdims=True)
    y = (x - mean) / jnp.sqrt(var + EPS)
    y = y * weight.reshape(1, -1, 1, 1) + bias.reshape(1, -1, 1, 1)
    return jnp.maximum(y, 0.0)


if __name__ == "__main__":
    key = jax.random.PRNGKey(0)
    kx, kw, kb = jax.random.split(key, 3)

    # Shapes from the module: BatchNorm2d(192) applied to (1, 192, 12, 12).
    N, C, H, W = 1, 192, 12, 12
    x = jax.random.normal(kx, (N, C, H, W), dtype=jnp.float32)
    # Exercise the affine path with non-trivial gamma/beta.
    weight = 1.0 + 0.1 * jax.random.normal(kw, (C,), dtype=jnp.float32)
    bias = 0.1 * jax.random.normal(kb, (C,), dtype=jnp.float32)

    # TODO(synk): nn.BatchNorm2d in train mode also updates running_mean /
    # running_var; that stateful side effect is not modeled here (the forward
    # output is unaffected since training-mode normalization uses batch stats).
    out = batchnorm_relu(x, weight, bias)
    out = jax.block_until_ready(out)

    ref = reference(x, weight, bias)
    assert out.shape == (N, C, H, W)
    assert jnp.allclose(out, ref, atol=2e-4, rtol=2e-4)
    print("KERNEL_OK")
</pallas_src>

<mosaic_0001>
module attributes {stable_mosaic.version = 11 : i64} {
  func.func @bn_relu_kernel(%arg0: i32, %arg1: memref<96x256xf32, #tpu.memory_space<vmem>>, %arg2: memref<96x2xf32, #tpu.memory_space<vmem>>, %arg3: memref<96x256xf32, #tpu.memory_space<vmem>>) attributes {dimension_semantics = [#tpu.dimension_semantics<parallel>], iteration_bounds = array<i64: 2>, scalar_prefetch = 0 : i64, scratch_operands = 0 : i64, tpu.core_type = #tpu.core_type<tc>, window_params = [{transform_indices = @transform_0, window_bounds = array<i64: 96, 256>}, {transform_indices = @transform_1, window_bounds = array<i64: 96, 2>}, {transform_indices = @transform_2, window_bounds = array<i64: 96, 256>}]} {
    %c0 = arith.constant 0 : index
    %c0_0 = arith.constant 0 : index
    %0 = vector.load %arg1[%c0, %c0_0] : memref<96x256xf32, #tpu.memory_space<vmem>>, vector<96x256xf32>
    %cst = arith.constant 1.000000e+00 : f32
    %1 = vector.broadcast %cst : f32 to vector<256x128xf32>
    %cst_1 = arith.constant dense<0.000000e+00> : vector<96x128xf32>
    %2 = tpu.matmul %0, %1, %cst_1 {dimension_numbers = #tpu.dot_dimension_numbers<[1], [0], [0], [1], [0, 0, 1, 1], [], []>, precision = #tpu.contract_precision<fp32>} : vector<96x256xf32>, vector<256x128xf32>, vector<96x128xf32> -> vector<96x128xf32>
    %3 = vector.extract_strided_slice %2 {offsets = [0, 0], sizes = [96, 1], strides = [1, 1]} : vector<96x128xf32> to vector<96x1xf32>
    %4 = arith.mulf %0, %0 : vector<96x256xf32>
    %cst_2 = arith.constant dense<0.000000e+00> : vector<96x128xf32>
    %5 = tpu.matmul %4, %1, %cst_2 {dimension_numbers = #tpu.dot_dimension_numbers<[1], [0], [0], [1], [0, 0, 1, 1], [], []>, precision = #tpu.contract_precision<fp32>} : vector<96x256xf32>, vector<256x128xf32>, vector<96x128xf32> -> vector<96x128xf32>
    %6 = vector.extract_strided_slice %5 {offsets = [0, 0], sizes = [96, 1], strides = [1, 1]} : vector<96x128xf32> to vector<96x1xf32>
    %cst_3 = arith.constant 0.0069444445 : f32
    %7 = vector.broadcast %cst_3 : f32 to vector<96x1xf32>
    %8 = arith.mulf %3, %7 : vector<96x1xf32>
    %cst_4 = arith.constant 0.0069444445 : f32
    %9 = vector.broadcast %cst_4 : f32 to vector<96x1xf32>
    %10 = arith.mulf %6, %9 : vector<96x1xf32>
    %11 = arith.mulf %8, %8 : vector<96x1xf32>
    %12 = arith.subf %10, %11 : vector<96x1xf32>
    %cst_5 = arith.constant 1.000000e-03 : f32
    %13 = vector.broadcast %cst_5 : f32 to vector<96x1xf32>
    %14 = arith.addf %12, %13 : vector<96x1xf32>
    %15 = math.rsqrt %14 : vector<96x1xf32>
    %c0_6 = arith.constant 0 : index
    %c0_7 = arith.constant 0 : index
    %16 = vector.load %arg2[%c0_6, %c0_7] : memref<96x2xf32, #tpu.memory_space<vmem>>, vector<96x2xf32>
    %17 = vector.extract_strided_slice %16 {offsets = [0, 0], sizes = [96, 1], strides = [1, 1]} : vector<96x2xf32> to vector<96x1xf32>
    %18 = vector.extract_strided_slice %16 {offsets = [0, 1], sizes = [96, 1], strides = [1, 1]} : vector<96x2xf32> to vector<96x1xf32>
    %19 = arith.mulf %17, %15 : vector<96x1xf32>
    %20 = arith.mulf %8, %19 : vector<96x1xf32>
    %21 = arith.subf %18, %20 : vector<96x1xf32>
    %22 = vector.broadcast %19 : vector<96x1xf32> to vector<96x256xf32>
    %23 = arith.mulf %0, %22 : vector<96x256xf32>
    %24 = vector.broadcast %21 : vector<96x1xf32> to vector<96x256xf32>
    %25 = arith.addf %23, %24 : vector<96x256xf32>
    %cst_8 = arith.constant 0.000000e+00 : f32
    %26 = vector.broadcast %cst_8 : f32 to vector<96x256xf32>
    %27 = arith.maximumf %25, %26 : vector<96x256xf32>
    %c0_9 = arith.constant 0 : index
    %c0_10 = arith.constant 0 : index
    %28 = vector.load %arg3[%c0_9, %c0_10] : memref<96x256xf32, #tpu.memory_space<vmem>>, vector<96x256xf32>
    tpu.vector_store %arg3[%c0_9, %c0_10], %27 {strides = array<i32>} : memref<96x256xf32, #tpu.memory_space<vmem>>, vector<96x256xf32>,
    return
  }
  func.func @transform_0(%arg0: i32) -> (i32, i32) {
    %c0_i32 = arith.constant 0 : i32
    %c0_i32_0 = arith.constant 0 : i32
    return %arg0, %c0_i32 : i32, i32
  }
  func.func @transform_1(%arg0: i32) -> (i32, i32) {
    %c0_i32 = arith.constant 0 : i32
    %c0_i32_0 = arith.constant 0 : i32
    return %arg0, %c0_i32 : i32, i32
  }
  func.func @transform_2(%arg0: i32) -> (i32, i32) {
    %c0_i32 = arith.constant 0 : i32
    %c0_i32_0 = arith.constant 0 : i32
    return %arg0, %c0_i32 : i32, i32
  }
}

</mosaic_0001>

<llo_original>
// kernel: tpu_custom_call.1
$region0: #{tpu_custom_call.1}
  #allocation0 [shape = 'u32[]', space=smem, size = 0x4, offset = 0x4, fixed_abs, tag = 'smem constant byte address 0x4 - core index']
  #allocation1 [shape = 'u32[144,128]{1,0:T(1,128)}', space=vmem, size = 0x12000, scoped, tag = 'internal scratch']
  %s0 = inlined_call_operand.hbm [shape: f32[192,256], index: 0, kind: input, shape index: {}]
  %s1 = inlined_call_operand.vmem [shape: f32[192,2], index: 1, kind: input, shape index: {}]
  %s2 = inlined_call_operand.hbm [shape: f32[192,256], index: 2, kind: output, shape index: {}]
  %s3 = sld [smem:[#allocation0]]
  $region45: #{tpu_custom_call.1} parent=0
    _
  %s5 = ssub.s32 1, %s3
  %s6 = scalar_select 0, %s5, %s3
  $region1: #{tpu_custom_call.1} parent=0
    #allocation2 [shape = 'u8[196608]{0}', space=vmem, size = 0x30000, scoped, tag = 'input window, operand 0']
    #allocation3 [shape = 's32[2]{0}', space=sflag, size = 0x8, scoped, tag = 'scoped memory for tpu_custom_call.1']
    #allocation4 [shape = 's32[2]{0}', space=sflag, size = 0x8, scoped, tag = 'scoped memory for tpu_custom_call.1']
    #allocation5 [shape = 'u8[196608]{0}', space=vmem, size = 0x30000, scoped, tag = 'output window, operand 0']
    %7 = vsyncpa [#allocation3], 0
    %s8 = scalar_lea.sflag [#allocation3], 1
    %9 = vsyncpa %s8, 0
    %10 = vsyncpa [#allocation4], 0
    %s11 = scalar_lea.sflag [#allocation4], 1
    %12 = vsyncpa %s11, 0
    loop: start=0, step=1, limit=4
    $region2: #{tpu_custom_call.1} parent=1 // loop_pre_header
      _
    $region3: #{tpu_custom_call.1} parent=1 // loop_header
      %s14 = sphi 0, %s18
      %p15 = scmp.ge.s32.totalorder %s14, 4
      %s24 = sphi 0, %s26
      %s27 = sphi 0, %s24
      %s28 = sphi 0, %s27
      %s44 = sphi 0, %s28
      %s50 = sphi 0, %s52
      %s53 = sphi 0, %s50
      %s54 = sphi 0, %s53
      %s70 = sphi 0, %s54
      %s76 = sphi 0, %s78
      %s79 = sphi 0, %s76
      %s80 = sphi 0, %s79
      %s96 = sphi 0, %s80
    $region4: #{tpu_custom_call.1} parent=1 // loop_header_branch
      %17 = sbr.rel (%p15) target = $region8
    $region5: #{tpu_custom_call.1} parent=1 // loop_body
      %s19 = ssub.s32 %s14, 1
      %s20 = ssub.s32 %s14, 2
      %s21 = sadd.s32 %s14, 1
      %s22 = ssub.s32 %s14, %s21
      %p23 = scmp.eq.s32.totalorder %s22, 0
      %s25 = sadd.s32 %s24, 1
      %s26 = scalar_select %p23, %s24, %s25
      %p29 = pneg %p23
      %p30 = scmp.eq.s32.totalorder %s14, 1
      %p31 = por %p29, %p30
      %p32 = scmp.ne.s32.totalorder %s24, %s27
      %p33 = scmp.eq.s32.totalorder %s14, 0
      %p34 = por %p32, %p33
      %p35 = scmp.ne.s32.totalorder %s24, %s27
      %p36 = scmp.eq.s32.totalorder %s19, 1
      %p37 = por %p35, %p36
      %p38 = scmp.ne.s32.totalorder %s27, %s28
      %p39 = scmp.eq.s32.totalorder %s19, 0
      %p40 = por %p38, %p39
      %p41 = scmp.ne.s32.totalorder %s27, %s28
      %p42 = scmp.eq.s32.totalorder %s20, 1
      %p43 = por %p41, %p42
      %p45 = scmp.ne.s32.totalorder %s28, %s44
      %p46 = scmp.eq.s32.totalorder %s20, 0
      %p47 = por %p45, %p46
      %s48 = ssub.s32 %s14, %s21
      %p49 = scmp.eq.s32.totalorder %s48, 0
      %s51 = sadd.s32 %s50, 1
      %s52 = scalar_select %p49, %s50, %s51
      %p55 = pneg %p49
      %p56 = scmp.eq.s32.totalorder %s14, 1
      %p57 = por %p55, %p56
      %p58 = scmp.ne.s32.totalorder %s50, %s53
      %p59 = scmp.eq.s32.totalorder %s14, 0
      %p60 = por %p58, %p59
      %p61 = scmp.ne.s32.totalorder %s50, %s53
      %p62 = scmp.eq.s32.totalorder %s19, 1
      %p63 = por %p61, %p62
      %p64 = scmp.ne.s32.totalorder %s53, %s54
      %p65 = scmp.eq.s32.totalorder %s19, 0
      %p66 = por %p64, %p65
      %p67 = scmp.ne.s32.totalorder %s53, %s54
      %p68 = scmp.eq.s32.totalorder %s20, 1
      %p69 = por %p67, %p68
      %p71 = scmp.ne.s32.totalorder %s54, %s70
      %p72 = scmp.eq.s32.totalorder %s20, 0
      %p73 = por %p71, %p72
      %s74 = ssub.s32 %s14, %s21
      %p75 = scmp.eq.s32.totalorder %s74, 0
      %s77 = sadd.s32 %s76, 1
      %s78 = scalar_select %p75, %s76, %s77
      %p81 = pneg %p75
      %p82 = scmp.eq.s32.totalorder %s14, 1
      %p83 = por %p81, %p82
      %p84 = scmp.ne.s32.totalorder %s76, %s79
      %p85 = scmp.eq.s32.totalorder %s14, 0
      %p86 = por %p84, %p85
      %p87 = scmp.ne.s32.totalorder %s76, %s79
      %p88 = scmp.eq.s32.totalorder %s19, 1
      %p89 = por %p87, %p88
      %p90 = scmp.ne.s32.totalorder %s79, %s80
      %p91 = scmp.eq.s32.totalorder %s19, 0
      %p92 = por %p90, %p91
      %p93 = scmp.ne.s32.totalorder %s79, %s80
      %p94 = scmp.eq.s32.totalorder %s20, 1
      %p95 = por %p93, %p94
      %p97 = scmp.ne.s32.totalorder %s80, %s96
      %p98 = scmp.eq.s32.totalorder %s20, 0
      %p99 = por %p97, %p98
      %p100 = scmp.le.s32.totalorder 1, %s14
      %p101 = scmp.lt.s32.totalorder %s14, 3
      %p102 = pnand %p100, %p101
      %p103 = pneg %p102
      // Predicated region
      $region9: #{tpu_custom_call.1} parent=5 // pred_check
        _
      $region10: #{tpu_custom_call.1} parent=5 // pred_check_branch
        %105 = sbr.rel (%p102) target = $region12
      $region11: #{tpu_custom_call.1} parent=5 // pred_region
        %s106 = ssub.s32 %s14, 1
      $region12: #{tpu_custom_call.1} parent=5 // pred_fallthru
        _
      %p107 = scmp.lt.s32.totalorder %s14, 2
      // Predicated region
      $region13: #{tpu_custom_call.1} parent=5 // pred_check
        %p108 = pneg %p107
      $region14: #{tpu_custom_call.1} parent=5 // pred_check_branch
        %110 = sbr.rel (%p108) target = $region16
      $region15: #{tpu_custom_call.1} parent=5 // pred_region
        // Predicated region
        $region17: #{tpu_custom_call.1} parent=15 // pred_check
          %p111 = pneg %p34
        $region18: #{tpu_custom_call.1} parent=15 // pred_check_branch
          %113 = sbr.rel (%p111) target = $region20
        $region19: #{tpu_custom_call.1} parent=15 // pred_region
          %s114 = sand.u32 %s24, 1
          %s115 = scalar_lea.sflag [#allocation3], %s114
          %s116 = sand.u32 %s24, 1
          %s117 = smul.addr %s116, 192
          %s118 = scalar_lea.vmem [#allocation2], %s117
          %s119 = smul.u32 12, %s14
          %s121 = ssub.s32 3072, 3072
          %122 = vsyncadd %s115, %s121
          %s123 = smul.addr %s119, 2
          %s124 = smul.addr %s123, 128
          %s125 = scalar_lea.hbm %s0, %s124
          %s126 = sshll.u32 %s118, 4
          %s127 = int_to_ptr.vmem [resolvable:$true] %s126
          %132 = dma.hbm_to_vmem [thread:$0]  %s125, 3072, %s127, %s115, 256, 256, 16
        $region20: #{tpu_custom_call.1} parent=15 // pred_fallthru
          _
        // Predicated region
        $region21: #{tpu_custom_call.1} parent=15 // pred_check
          %p133 = pneg %p60
        $region22: #{tpu_custom_call.1} parent=15 // pred_check_branch
          %135 = sbr.rel (%p133) target = $region24
        $region23: #{tpu_custom_call.1} parent=15 // pred_region
          %s136 = smul.u32 12, %s14
          %p137 = scmp.lt.s32.totalorder %s136, 23
          %s138 = scalar_select %p137, %s136, 23
          %s139 = smul.addr %s138, 8
          %s140 = scalar_lea.vmem %s1, %s139
          %s141 = smul.u32 12, %s14
        $region24: #{tpu_custom_call.1} parent=15 // pred_fallthru
          _
      $region16: #{tpu_custom_call.1} parent=5 // pred_fallthru
        _
      %p142 = scmp.le.s32.totalorder 1, %s14
      %p143 = scmp.lt.s32.totalorder %s14, 3
      %p144 = pnand %p142, %p143
      %p145 = pneg %p144
      // Predicated region
      $region25: #{tpu_custom_call.1} parent=5 // pred_check
        _
      $region26: #{tpu_custom_call.1} parent=5 // pred_check_branch
        %147 = sbr.rel (%p144) target = $region28
      $region27: #{tpu_custom_call.1} parent=5 // pred_region
        %s148 = ssub.s32 %s14, 1
        %s149 = sand.u32 %s27, 1
        %s150 = scalar_lea.sflag [#allocation3], %s149
        %s151 = sand.u32 %s27, 1
        %s152 = smul.addr %s151, 192
        %s153 = scalar_lea.vmem [#allocation2], %s152
        // Predicated region
        $region29: #{tpu_custom_call.1} parent=27 // pred_check
          %p154 = pneg %p40
        $region30: #{tpu_custom_call.1} parent=27 // pred_check_branch
          %156 = sbr.rel (%p154) target = $region32
        $region31: #{tpu_custom_call.1} parent=27 // pred_region
          %157 = dma.done %s150, 3072
        $region32: #{tpu_custom_call.1} parent=27 // pred_fallthru
          _
        %s158 = sand.u32 %s27, 1
        %s159 = scalar_lea.sflag [#allocation3], %s158
        %s160 = sand.u32 %s27, 1
        %s161 = smul.addr %s160, 192
        %s162 = scalar_lea.vmem [#allocation2], %s161
        %p163 = pneg %p40
        %p164 = pneg %p37
        %s165 = smul.u32 12, %s19
        %p166 = scmp.lt.s32.totalorder %s165, 23
        %s167 = scalar_select %p166, %s165, 23
        %s168 = smul.addr %s167, 8
        %s169 = scalar_lea.vmem %s1, %s168
        %p170 = pneg %p66
        %p171 = pneg %p63
        %p172 = pneg %p92
        %p173 = pneg %p89
        %s174 = sand.u32 %s79, 1
        %s175 = scalar_lea.sflag [#allocation4], %s174
        %s176 = sand.u32 %s79, 1
        %s177 = smul.addr %s176, 192
        %s178 = scalar_lea.vmem [#allocation5], %s177
        %s179 = smul.u32 12, %s19
        %s180 = smul.u32 12, %s19
        %p181 = scmp.lt.s32.totalorder %s180, 23
        %s182 = scalar_select %p181, %s180, 23
        %s183 = smul.addr %s182, 8
        %s184 = scalar_lea.vmem %s1, %s183
        %s185 = smul.u32 12, %s19
        %s186 = smul.u32 12, %s19
        %v187 = vld [vmem:[%s153] sm:$0xff]
        %v188 = vld [vmem:[%s153 + $0x8] sm:$0xff]
        %v189 = vld [vmem:[%s153 + $0x10] sm:$0xff]
        %v190 = vld [vmem:[%s153 + $0x18] sm:$0xff]
        %v191 = vld [vmem:[%s153 + $0x20] sm:$0xff]
        %v192 = vld [vmem:[%s153 + $0x28] sm:$0xff]
        %v193 = vld [vmem:[%s153 + $0x30] sm:$0xff]
        %v194 = vld [vmem:[%s153 + $0x38] sm:$0xff]
        %v195 = vld [vmem:[%s153 + $0x40] sm:$0xff]
        %v196 = vld [vmem:[%s153 + $0x48] sm:$0xff]
        %v197 = vld [vmem:[%s153 + $0x50] sm:$0xff]
        %v198 = vld [vmem:[%s153 + $0x58] sm:$0xff]
        %v199 = vld [vmem:[%s153 + $0x60] sm:$0xff]
        %v200 = vld [vmem:[%s153 + $0x68] sm:$0xff]
        %v201 = vld [vmem:[%s153 + $0x70] sm:$0xff]
        %v202 = vld [vmem:[%s153 + $0x78] sm:$0xff]
        %v203 = vld [vmem:[%s153 + $0x80] sm:$0xff]
        %v204 = vld [vmem:[%s153 + $0x88] sm:$0xff]
        %v205 = vld [vmem:[%s153 + $0x90] sm:$0xff]
        %v206 = vld [vmem:[%s153 + $0x98] sm:$0xff]
        %v207 = vld [vmem:[%s153 + $0xa0] sm:$0xff]
        %v208 = vld [vmem:[%s153 + $0xa8] sm:$0xff]
        %v209 = vld [vmem:[%s153 + $0xb0] sm:$0xff]
        %v210 = vld [vmem:[%s153 + $0xb8] sm:$0xff]
        %211 = vmatprep.subr.mxu0 0.0
        %212 = vmatpush1.msra.mxu0 1.0
        %213 = vmatprep.subr.mxu0 0.0
        %214 = vmatpush1.msra.mxu0 1.0
        %215 = vmatprep.subr.mxu0 0.0
        %216 = vmatpush1.msra.mxu0 1.0
        %217 = vmatprep.subr.mxu0 0.0
        %218 = vmatpush1.msra.mxu0 1.0
        %219 = vmatprep.subr.mxu0 0.0
        %220 = vmatpush1.msra.mxu0 1.0
        %221 = vmatprep.subr.mxu0 0.0
        %222 = vmatpush1.msra.mxu0 1.0
        %223 = vmatprep.subr.mxu0 0.0
        %224 = vmatpush1.msra.mxu0 1.0
        %225 = vmatprep.subr.mxu0 0.0
        %226 = vmatpush1.msra.mxu0 1.0
        %227 = vmatprep.subr.mxu0 0.0
        %228 = vmatpush1.msra.mxu0 1.0
        %229 = vmatprep.subr.mxu0 0.0
        %230 = vmatpush1.msra.mxu0 1.0
        %231 = vmatprep.subr.mxu0 0.0
        %232 = vmatpush1.msra.mxu0 1.0
        %233 = vmatprep.subr.mxu0 0.0
        %234 = vmatpush1.msra.mxu0 1.0
        %235 = vmatprep.subr.mxu0 0.0
        %236 = vmatpush1.msra.mxu0 1.0
        %237 = vmatprep.subr.mxu0 0.0
        %238 = vmatpush1.msra.mxu0 1.0
        %239 = vmatprep.subr.mxu0 0.0
        %240 = vmatpush1.msra.mxu0 1.0
        %241 = vmatprep.subr.mxu0 0.0
        %242 = vmatpush1.msra.mxu0 1.0
        %243 = vmatprep.subr.mxu0 0.0
        %244 = vmatpush2.msra.mxu0 1.0
        %245 = vmatprep.subr.mxu0 0.0
        %246 = vmatpush2.msra.mxu0 1.0
        %247 = vmatprep.subr.mxu0 0.0
        %248 = vmatpush2.msra.mxu0 1.0
        %249 = vmatprep.subr.mxu0 0.0
        %250 = vmatpush2.msra.mxu0 1.0
        %251 = vmatprep.subr.mxu0 0.0
        %252 = vmatpush2.msra.mxu0 1.0
        %253 = vmatprep.subr.mxu0 0.0
        %254 = vmatpush2.msra.mxu0 1.0
        %255 = vmatprep.subr.mxu0 0.0
        %256 = vmatpush2.msra.mxu0 1.0
        %257 = vmatprep.subr.mxu0 0.0
        %258 = vmatpush2.msra.mxu0 1.0
        %259 = vmatprep.subr.mxu0 0.0
        %260 = vmatpush2.msra.mxu0 1.0
        %261 = vmatprep.subr.mxu0 0.0
        %262 = vmatpush2.msra.mxu0 1.0
        %263 = vmatprep.subr.mxu0 0.0
        %264 = vmatpush2.msra.mxu0 1.0
        %265 = vmatprep.subr.mxu0 0.0
        %266 = vmatpush2.msra.mxu0 1.0
        %267 = vmatprep.subr.mxu0 0.0
        %268 = vmatpush2.msra.mxu0 1.0
        %269 = vmatprep.subr.mxu0 0.0
        %270 = vmatpush2.msra.mxu0 1.0
        %271 = vmatprep.subr.mxu0 0.0
        %272 = vmatpush2.msra.mxu0 1.0
        %273 = vmatprep.subr.mxu0 0.0
        %274 = vmatpush2.msra.mxu0 1.0
        %v275 = vand.u32 %v188, 4294901760
        %v276 = vsub.f32 %v188, %v275
        %v277 = vand.u32 %v276, 4294901760
        %v278 = vsub.f32 %v276, %v277
        %v279 = vand.u32 %v278, 4294901760
        %280 = vmatprep.mubr.f32.mxu0 %v279
        %v281 = vand.u32 %v187, 4294901760
        %v282 = vsub.f32 %v187, %v281
        %v283 = vand.u32 %v282, 4294901760
        %v284 = vsub.f32 %v282, %v283
        %v285 = vand.u32 %v284, 4294901760
        %286 = vmatmul.mubr.f32.gmra.mxu0 %v285
        %v287 = vpop.f32.mrf.mxu0
        %v288 = vadd.f32 0.0, %v287
        %v289 = vpop.f32.mrf.mxu0
        %v290 = vand.u32 %v190, 4294901760
        %v291 = vsub.f32 %v190, %v290
        %v292 = vand.u32 %v291, 4294901760
        %v293 = vsub.f32 %v291, %v292
        %v294 = vand.u32 %v293, 4294901760
        %295 = vmatprep.mubr.f32.mxu0 %v294
        %v296 = vand.u32 %v189, 4294901760
        %v297 = vsub.f32 %v189, %v296
        %v298 = vand.u32 %v297, 4294901760
        %v299 = vsub.f32 %v297, %v298
        %v300 = vand.u32 %v299, 4294901760
        %301 = vmatmul.mubr.f32.gmra.mxu0 %v300
        %v302 = vpop.f32.mrf.mxu0
        %v303 = vadd.f32 0.0, %v302
        %v304 = vpop.f32.mrf.mxu0
        %v305 = vand.u32 %v192, 4294901760
        %v306 = vsub.f32 %v192, %v305
        %v307 = vand.u32 %v306, 4294901760
        %v308 = vsub.f32 %v306, %v307
        %v309 = vand.u32 %v308, 4294901760
        %310 = vmatprep.mubr.f32.mxu0 %v309
        %v311 = vand.u32 %v191, 4294901760
        %v312 = vsub.f32 %v191, %v311
        %v313 = vand.u32 %v312, 4294901760
        %v314 = vsub.f32 %v312, %v313
        %v315 = vand.u32 %v314, 4294901760
        %316 = vmatmul.mubr.f32.gmra.mxu0 %v315
        %v317 = vpop.f32.mrf.mxu0
        %v318 = vadd.f32 0.0, %v317
        %v319 = vpop.f32.mrf.mxu0
        %v320 = vand.u32 %v194, 4294901760
        %v321 = vsub.f32 %v194, %v320
        %v322 = vand.u32 %v321, 4294901760
        %v323 = vsub.f32 %v321, %v322
        %v324 = vand.u32 %v323, 4294901760
        %325 = vmatprep.mubr.f32.mxu0 %v324
        %v326 = vand.u32 %v193, 4294901760
        %v327 = vsub.f32 %v193, %v326
        %v328 = vand.u32 %v327, 4294901760
        %v329 = vsub.f32 %v327, %v328
        %v330 = vand.u32 %v329, 4294901760
        %331 = vmatmul.mubr.f32.gmra.mxu0 %v330
        %v332 = vpop.f32.mrf.mxu0
        %v333 = vadd.f32 0.0, %v332
        %v334 = vpop.f32.mrf.mxu0
        %v335 = vand.u32 %v196, 4294901760
        %v336 = vsub.f32 %v196, %v335
        %v337 = vand.u32 %v336, 4294901760
        %v338 = vsub.f32 %v336, %v337
        %v339 = vand.u32 %v338, 4294901760
        %340 = vmatprep.mubr.f32.mxu0 %v339
        %v341 = vand.u32 %v195, 4294901760
        %v342 = vsub.f32 %v195, %v341
        %v343 = vand.u32 %v342, 4294901760
        %v344 = vsub.f32 %v342, %v343
        %v345 = vand.u32 %v344, 4294901760
        %346 = vmatmul.mubr.f32.gmra.mxu0 %v345
        %v347 = vpop.f32.mrf.mxu0
        %v348 = vadd.f32 0.0, %v347
        %v349 = vpop.f32.mrf.mxu0
        %v350 = vand.u32 %v198, 4294901760
        %v351 = vsub.f32 %v198, %v350
        %v352 = vand.u32 %v351, 4294901760
        %v353 = vsub.f32 %v351, %v352
        %v354 = vand.u32 %v353, 4294901760
        %355 = vmatprep.mubr.f32.mxu0 %v354
        %v356 = vand.u32 %v197, 4294901760
        %v357 = vsub.f32 %v197, %v356
        %v358 = vand.u32 %v357, 4294901760
        %v359 = vsub.f32 %v357, %v358
        %v360 = vand.u32 %v359, 4294901760
        %361 = vmatmul.mubr.f32.gmra.mxu0 %v360
        %v362 = vpop.f32.mrf.mxu0
        %v363 = vadd.f32 0.0, %v362
        %v364 = vpop.f32.mrf.mxu0
        %v365 = vand.u32 %v200, 4294901760
        %v366 = vsub.f32 %v200, %v365
        %v367 = vand.u32 %v366, 4294901760
        %v368 = vsub.f32 %v366, %v367
        %v369 = vand.u32 %v368, 4294901760
        %370 = vmatprep.mubr.f32.mxu0 %v369
        %v371 = vand.u32 %v199, 4294901760
        %v372 = vsub.f32 %v199, %v371
        %v373 = vand.u32 %v372, 4294901760
        %v374 = vsub.f32 %v372, %v373
        %v375 = vand.u32 %v374, 4294901760
        %376 = vmatmul.mubr.f32.gmra.mxu0 %v375
        %v377 = vpop.f32.mrf.mxu0
        %v378 = vadd.f32 0.0, %v377
        %v379 = vpop.f32.mrf.mxu0
        %v380 = vand.u32 %v202, 4294901760
        %v381 = vsub.f32 %v202, %v380
        %v382 = vand.u32 %v381, 4294901760
        %v383 = vsub.f32 %v381, %v382
        %v384 = vand.u32 %v383, 4294901760
        %385 = vmatprep.mubr.f32.mxu0 %v384
        %v386 = vand.u32 %v201, 4294901760
        %v387 = vsub.f32 %v201, %v386
        %v388 = vand.u32 %v387, 4294901760
        %v389 = vsub.f32 %v387, %v388
        %v390 = vand.u32 %v389, 4294901760
        %391 = vmatmul.mubr.f32.gmra.mxu0 %v390
        %v392 = vpop.f32.mrf.mxu0
        %v393 = vadd.f32 0.0, %v392
        %v394 = vpop.f32.mrf.mxu0
        %v395 = vand.u32 %v204, 4294901760
        %v396 = vsub.f32 %v204, %v395
        %v397 = vand.u32 %v396, 4294901760
        %v398 = vsub.f32 %v396, %v397
        %v399 = vand.u32 %v398, 4294901760
        %400 = vmatprep.mubr.f32.mxu0 %v399
        %v401 = vand.u32 %v203, 4294901760
        %v402 = vsub.f32 %v203, %v401
        %v403 = vand.u32 %v402, 4294901760
        %v404 = vsub.f32 %v402, %v403
        %v405 = vand.u32 %v404, 4294901760
        %406 = vmatmul.mubr.f32.gmra.mxu0 %v405
        %v407 = vpop.f32.mrf.mxu0
        %v408 = vadd.f32 0.0, %v407
        %v409 = vpop.f32.mrf.mxu0
        %v410 = vand.u32 %v206, 4294901760
        %v411 = vsub.f32 %v206, %v410
        %v412 = vand.u32 %v411, 4294901760
        %v413 = vsub.f32 %v411, %v412
        %v414 = vand.u32 %v413, 4294901760
        %415 = vmatprep.mubr.f32.mxu0 %v414
        %v416 = vand.u32 %v205, 4294901760
        %v417 = vsub.f32 %v205, %v416
        %v418 = vand.u32 %v417, 4294901760
        %v419 = vsub.f32 %v417, %v418
        %v420 = vand.u32 %v419, 4294901760
        %421 = vmatmul.mubr.f32.gmra.mxu0 %v420
        %v422 = vpop.f32.mrf.mxu0
        %v423 = vadd.f32 0.0, %v422
        %v424 = vpop.f32.mrf.mxu0
        %v425 = vand.u32 %v208, 4294901760
        %v426 = vsub.f32 %v208, %v425
        %v427 = vand.u32 %v426, 4294901760
        %v428 = vsub.f32 %v426, %v427
        %v429 = vand.u32 %v428, 4294901760
        %430 = vmatprep.mubr.f32.mxu0 %v429
        %v431 = vand.u32 %v207, 4294901760
        %v432 = vsub.f32 %v207, %v431
        %v433 = vand.u32 %v432, 4294901760
        %v434 = vsub.f32 %v432, %v433
        %v435 = vand.u32 %v434, 4294901760
        %436 = vmatmul.mubr.f32.gmra.mxu0 %v435
        %v437 = vpop.f32.mrf.mxu0
        %v438 = vadd.f32 0.0, %v437
        %v439 = vpop.f32.mrf.mxu0
        %v440 = vand.u32 %v210, 4294901760
        %v441 = vsub.f32 %v210, %v440
        %v442 = vand.u32 %v441, 4294901760
        %v443 = vsub.f32 %v441, %v442
        %v444 = vand.u32 %v443, 4294901760
        %445 = vmatprep.mubr.f32.mxu0 %v444
        %v446 = vand.u32 %v209, 4294901760
        %v447 = vsub.f32 %v209, %v446
        %v448 = vand.u32 %v447, 4294901760
        %v449 = vsub.f32 %v447, %v448
        %v450 = vand.u32 %v449, 4294901760
        %451 = vmatmul.mubr.f32.gmra.mxu0 %v450
        %v452 = vpop.f32.mrf.mxu0
        %v453 = vadd.f32 0.0, %v452
        %v454 = vpop.f32.mrf.mxu0
        %455 = vdwg.mxu0
        %456 = vmatprep.subr.mxu0 0.0
        %457 = vmatpush1.msra.mxu0 0.0
        %458 = vmatprep.subr.mxu0 0.0
        %459 = vmatpush1.msra.mxu0 0.0
        %460 = vmatprep.subr.mxu0 0.0
        %461 = vmatpush1.msra.mxu0 0.0
        %462 = vmatprep.subr.mxu0 0.0
        %463 = vmatpush1.msra.mxu0 0.0
        %464 = vmatprep.subr.mxu0 0.0
        %465 = vmatpush1.msra.mxu0 0.0
        %466 = vmatprep.subr.mxu0 0.0
        %467 = vmatpush1.msra.mxu0 0.0
        %468 = vmatprep.subr.mxu0 0.0
        %469 = vmatpush1.msra.mxu0 0.0
        %470 = vmatprep.subr.mxu0 0.0
        %471 = vmatpush1.msra.mxu0 0.0
        %472 = vmatprep.subr.mxu0 0.0
        %473 = vmatpush1.msra.mxu0 0.0
        %474 = vmatprep.subr.mxu0 0.0
        %475 = vmatpush1.msra.mxu0 0.0
        %476 = vmatprep.subr.mxu0 0.0
        %477 = vmatpush1.msra.mxu0 0.0
        %478 = vmatprep.subr.mxu0 0.0
        %479 = vmatpush1.msra.mxu0 0.0
        %480 = vmatprep.subr.mxu0 0.0
        %481 = vmatpush1.msra.mxu0 0.0
        %482 = vmatprep.subr.mxu0 0.0
        %483 = vmatpush1.msra.mxu0 0.0
        %484 = vmatprep.subr.mxu0 0.0
        %485 = vmatpush1.msra.mxu0 0.0
        %486 = vmatprep.subr.mxu0 0.0
        %487 = vmatpush1.msra.mxu0 0.0
        %488 = vmatprep.subr.mxu0 0.0
        %489 = vmatpush2.msra.mxu0 0.0
        %490 = vmatprep.subr.mxu0 0.0
        %491 = vmatpush2.msra.mxu0 0.0
        %492 = vmatprep.subr.mxu0 0.0
        %493 = vmatpush2.msra.mxu0 0.0
        %494 = vmatprep.subr.mxu0 0.0
        %495 = vmatpush2.msra.mxu0 0.0
        %496 = vmatprep.subr.mxu0 0.0
        %497 = vmatpush2.msra.mxu0 0.0
        %498 = vmatprep.subr.mxu0 0.0
        %499 = vmatpush2.msra.mxu0 0.0
        %500 = vmatprep.subr.mxu0 0.0
        %501 = vmatpush2.msra.mxu0 0.0
        %502 = vmatprep.subr.mxu0 0.0
        %503 = vmatpush2.msra.mxu0 0.0
        %504 = vmatprep.subr.mxu0 0.0
        %505 = vmatpush2.msra.mxu0 0.0
        %506 = vmatprep.subr.mxu0 0.0
        %507 = vmatpush2.msra.mxu0 0.0
        %508 = vmatprep.subr.mxu0 0.0
        %509 = vmatpush2.msra.mxu0 0.0
        %510 = vmatprep.subr.mxu0 0.0
        %511 = vmatpush2.msra.mxu0 0.0
        %512 = vmatprep.subr.mxu0 0.0
        %513 = vmatpush2.msra.mxu0 0.0
        %514 = vmatprep.subr.mxu0 0.0
        %515 = vmatpush2.msra.mxu0 0.0
        %516 = vmatprep.subr.mxu0 0.0
        %517 = vmatpush2.msra.mxu0 0.0
        %518 = vmatprep.subr.mxu0 0.0
        %519 = vmatpush2.msra.mxu0 0.0
        %v520 = vand.u32 %v188, 4294901760
        %521 = vmatprep.mubr.f32.mxu0 %v520
        %v522 = vand.u32 %v187, 4294901760
        %523 = vmatmul.mubr.f32.gmra.mxu0 %v522
        %v524 = vpop.f32.mrf.mxu0
        %v525 = vadd.f32 %v288, %v524
        %v526 = vpop.f32.mrf.mxu0
        %v527 = vand.u32 %v190, 4294901760
        %528 = vmatprep.mubr.f32.mxu0 %v527
        %v529 = vand.u32 %v189, 4294901760
        %530 = vmatmul.mubr.f32.gmra.mxu0 %v529
        %v531 = vpop.f32.mrf.mxu0
        %v532 = vadd.f32 %v303, %v531
        %v533 = vpop.f32.mrf.mxu0
        %v534 = vand.u32 %v192, 4294901760
        %535 = vmatprep.mubr.f32.mxu0 %v534
        %v536 = vand.u32 %v191, 4294901760
        %537 = vmatmul.mubr.f32.gmra.mxu0 %v536
        %v538 = vpop.f32.mrf.mxu0
        %v539 = vadd.f32 %v318, %v538
        %v540 = vpop.f32.mrf.mxu0
        %v541 = vand.u32 %v194, 4294901760
        %542 = vmatprep.mubr.f32.mxu0 %v541
        %v543 = vand.u32 %v193, 4294901760
        %544 = vmatmul.mubr.f32.gmra.mxu0 %v543
        %v545 = vpop.f32.mrf.mxu0
        %v546 = vadd.f32 %v333, %v545
        %v547 = vpop.f32.mrf.mxu0
        %v548 = vand.u32 %v196, 4294901760
        %549 = vmatprep.mubr.f32.mxu0 %v548
        %v550 = vand.u32 %v195, 4294901760
        %551 = vmatmul.mubr.f32.gmra.mxu0 %v550
        %v552 = vpop.f32.mrf.mxu0
        %v553 = vadd.f32 %v348, %v552
        %v554 = vpop.f32.mrf.mxu0
        %v555 = vand.u32 %v198, 4294901760
        %556 = vmatprep.mubr.f32.mxu0 %v555
        %v557 = vand.u32 %v197, 4294901760
        %558 = vmatmul.mubr.f32.gmra.mxu0 %v557
        %v559 = vpop.f32.mrf.mxu0
        %v560 = vadd.f32 %v363, %v559
        %v561 = vpop.f32.mrf.mxu0
        %v562 = vand.u32 %v200, 4294901760
        %563 = vmatprep.mubr.f32.mxu0 %v562
        %v564 = vand.u32 %v199, 4294901760
        %565 = vmatmul.mubr.f32.gmra.mxu0 %v564
        %v566 = vpop.f32.mrf.mxu0
        %v567 = vadd.f32 %v378, %v566
        %v568 = vpop.f32.mrf.mxu0
        %v569 = vand.u32 %v202, 4294901760
        %570 = vmatprep.mubr.f32.mxu0 %v569
        %v571 = vand.u32 %v201, 4294901760
        %572 = vmatmul.mubr.f32.gmra.mxu0 %v571
        %v573 = vpop.f32.mrf.mxu0
        %v574 = vadd.f32 %v393, %v573
        %v575 = vpop.f32.mrf.mxu0
        %v576 = vand.u32 %v204, 4294901760
        %577 = vmatprep.mubr.f32.mxu0 %v576
        %v578 = vand.u32 %v203, 4294901760
        %579 = vmatmul.mubr.f32.gmra.mxu0 %v578
        %v580 = vpop.f32.mrf.mxu0
        %v581 = vadd.f32 %v408, %v580
        %v582 = vpop.f32.mrf.mxu0
        %v583 = vand.u32 %v206, 4294901760
        %584 = vmatprep.mubr.f32.mxu0 %v583
        %v585 = vand.u32 %v205, 4294901760
        %586 = vmatmul.mubr.f32.gmra.mxu0 %v585
        %v587 = vpop.f32.mrf.mxu0
        %v588 = vadd.f32 %v423, %v587
        %v589 = vpop.f32.mrf.mxu0
        %v590 = vand.u32 %v208, 4294901760
        %591 = vmatprep.mubr.f32.mxu0 %v590
        %v592 = vand.u32 %v207, 4294901760
        %593 = vmatmul.mubr.f32.gmra.mxu0 %v592
        %v594 = vpop.f32.mrf.mxu0
        %v595 = vadd.f32 %v438, %v594
        %v596 = vpop.f32.mrf.mxu0
        %v597 = vand.u32 %v210, 4294901760
        %598 = vmatprep.mubr.f32.mxu0 %v597
        %v599 = vand.u32 %v209, 4294901760
        %600 = vmatmul.mubr.f32.gmra.mxu0 %v599
        %v601 = vpop.f32.mrf.mxu0
        %v602 = vadd.f32 %v453, %v601
        %v603 = vpop.f32.mrf.mxu0
        %604 = vdwg.mxu0
        %605 = vmatprep.subr.mxu0 0.0
        %606 = vmatpush1.msra.mxu0 0.0
        %607 = vmatprep.subr.mxu0 0.0
        %608 = vmatpush1.msra.mxu0 0.0
        %609 = vmatprep.subr.mxu0 0.0
        %610 = vmatpush1.msra.mxu0 0.0
        %611 = vmatprep.subr.mxu0 0.0
        %612 = vmatpush1.msra.mxu0 0.0
        %613 = vmatprep.subr.mxu0 0.0
        %614 = vmatpush1.msra.mxu0 0.0
        %615 = vmatprep.subr.mxu0 0.0
        %616 = vmatpush1.msra.mxu0 0.0
        %617 = vmatprep.subr.mxu0 0.0
        %618 = vmatpush1.msra.mxu0 0.0
        %619 = vmatprep.subr.mxu0 0.0
        %620 = vmatpush1.msra.mxu0 0.0
        %621 = vmatprep.subr.mxu0 0.0
        %622 = vmatpush1.msra.mxu0 0.0
        %623 = vmatprep.subr.mxu0 0.0
        %624 = vmatpush1.msra.mxu0 0.0
        %625 = vmatprep.subr.mxu0 0.0
        %626 = vmatpush1.msra.mxu0 0.0
        %627 = vmatprep.subr.mxu0 0.0
        %628 = vmatpush1.msra.mxu0 0.0
        %629 = vmatprep.subr.mxu0 0.0
        %630 = vmatpush1.msra.mxu0 0.0
        %631 = vmatprep.subr.mxu0 0.0
        %632 = vmatpush1.msra.mxu0 0.0
        %633 = vmatprep.subr.mxu0 0.0
        %634 = vmatpush1.msra.mxu0 0.0
        %635 = vmatprep.subr.mxu0 0.0
        %636 = vmatpush1.msra.mxu0 0.0
        %637 = vmatprep.subr.mxu0 0.0
        %638 = vmatpush2.msra.mxu0 0.0
        %639 = vmatprep.subr.mxu0 0.0
        %640 = vmatpush2.msra.mxu0 0.0
        %641 = vmatprep.subr.mxu0 0.0
        %642 = vmatpush2.msra.mxu0 0.0
        %643 = vmatprep.subr.mxu0 0.0
        %644 = vmatpush2.msra.mxu0 0.0
        %645 = vmatprep.subr.mxu0 0.0
        %646 = vmatpush2.msra.mxu0 0.0
        %647 = vmatprep.subr.mxu0 0.0
        %648 = vmatpush2.msra.mxu0 0.0
        %649 = vmatprep.subr.mxu0 0.0
        %650 = vmatpush2.msra.mxu0 0.0
        %651 = vmatprep.subr.mxu0 0.0
        %652 = vmatpush2.msra.mxu0 0.0
        %653 = vmatprep.subr.mxu0 0.0
        %654 = vmatpush2.msra.mxu0 0.0
        %655 = vmatprep.subr.mxu0 0.0
        %656 = vmatpush2.msra.mxu0 0.0
        %657 = vmatprep.subr.mxu0 0.0
        %658 = vmatpush2.msra.mxu0 0.0
        %659 = vmatprep.subr.mxu0 0.0
        %660 = vmatpush2.msra.mxu0 0.0
        %661 = vmatprep.subr.mxu0 0.0
        %662 = vmatpush2.msra.mxu0 0.0
        %663 = vmatprep.subr.mxu0 0.0
        %664 = vmatpush2.msra.mxu0 0.0
        %665 = vmatprep.subr.mxu0 0.0
        %666 = vmatpush2.msra.mxu0 0.0
        %667 = vmatprep.subr.mxu0 0.0
        %668 = vmatpush2.msra.mxu0 0.0
        %v669 = vand.u32 %v188, 4294901760
        %v670 = vsub.f32 %v188, %v669
        %671 = vmatprep.mubr.f32.mxu0 %v670
        %v672 = vand.u32 %v187, 4294901760
        %v673 = vsub.f32 %v187, %v672
        %674 = vmatmul.mubr.f32.gmra.mxu0 %v673
        %v675 = vpop.f32.mrf.mxu0
        %v676 = vadd.f32 %v525, %v675
        %v677 = vpop.f32.mrf.mxu0
        %v678 = vand.u32 %v190, 4294901760
        %v679 = vsub.f32 %v190, %v678
        %680 = vmatprep.mubr.f32.mxu0 %v679
        %v681 = vand.u32 %v189, 4294901760
        %v682 = vsub.f32 %v189, %v681
        %683 = vmatmul.mubr.f32.gmra.mxu0 %v682
        %v684 = vpop.f32.mrf.mxu0
        %v685 = vadd.f32 %v532, %v684
        %v686 = vpop.f32.mrf.mxu0
        %v687 = vand.u32 %v192, 4294901760
        %v688 = vsub.f32 %v192, %v687
        %689 = vmatprep.mubr.f32.mxu0 %v688
        %v690 = vand.u32 %v191, 4294901760
        %v691 = vsub.f32 %v191, %v690
        %692 = vmatmul.mubr.f32.gmra.mxu0 %v691
        %v693 = vpop.f32.mrf.mxu0
        %v694 = vadd.f32 %v539, %v693
        %v695 = vpop.f32.mrf.mxu0
        %v696 = vand.u32 %v194, 4294901760
        %v697 = vsub.f32 %v194, %v696
        %698 = vmatprep.mubr.f32.mxu0 %v697
        %v699 = vand.u32 %v193, 4294901760
        %v700 = vsub.f32 %v193, %v699
        %701 = vmatmul.mubr.f32.gmra.mxu0 %v700
        %v702 = vpop.f32.mrf.mxu0
        %v703 = vadd.f32 %v546, %v702
        %v704 = vpop.f32.mrf.mxu0
        %v705 = vand.u32 %v196, 4294901760
        %v706 = vsub.f32 %v196, %v705
        %707 = vmatprep.mubr.f32.mxu0 %v706
        %v708 = vand.u32 %v195, 4294901760
        %v709 = vsub.f32 %v195, %v708
        %710 = vmatmul.mubr.f32.gmra.mxu0 %v709
        %v711 = vpop.f32.mrf.mxu0
        %v712 = vadd.f32 %v553, %v711
        %v713 = vpop.f32.mrf.mxu0
        %v714 = vand.u32 %v198, 4294901760
        %v715 = vsub.f32 %v198, %v714
        %716 = vmatprep.mubr.f32.mxu0 %v715
        %v717 = vand.u32 %v197, 4294901760
        %v718 = vsub.f32 %v197, %v717
        %719 = vmatmul.mubr.f32.gmra.mxu0 %v718
        %v720 = vpop.f32.mrf.mxu0
        %v721 = vadd.f32 %v560, %v720
        %v722 = vpop.f32.mrf.mxu0
        %v723 = vand.u32 %v200, 4294901760
        %v724 = vsub.f32 %v200, %v723
        %725 = vmatprep.mubr.f32.mxu0 %v724
        %v726 = vand.u32 %v199, 4294901760
        %v727 = vsub.f32 %v199, %v726
        %728 = vmatmul.mubr.f32.gmra.mxu0 %v727
        %v729 = vpop.f32.mrf.mxu0
        %v730 = vadd.f32 %v567, %v729
        %v731 = vpop.f32.mrf.mxu0
        %v732 = vand.u32 %v202, 4294901760
        %v733 = vsub.f32 %v202, %v732
        %734 = vmatprep.mubr.f32.mxu0 %v733
        %v735 = vand.u32 %v201, 4294901760
        %v736 = vsub.f32 %v201, %v735
        %737 = vmatmul.mubr.f32.gmra.mxu0 %v736
        %v738 = vpop.f32.mrf.mxu0
        %v739 = vadd.f32 %v574, %v738
        %v740 = vpop.f32.mrf.mxu0
        %v741 = vand.u32 %v204, 4294901760
        %v742 = vsub.f32 %v204, %v741
        %743 = vmatprep.mubr.f32.mxu0 %v742
        %v744 = vand.u32 %v203, 4294901760
        %v745 = vsub.f32 %v203, %v744
        %746 = vmatmul.mubr.f32.gmra.mxu0 %v745
        %v747 = vpop.f32.mrf.mxu0
        %v748 = vadd.f32 %v581, %v747
        %v749 = vpop.f32.mrf.mxu0
        %v750 = vand.u32 %v206, 4294901760
        %v751 = vsub.f32 %v206, %v750
        %752 = vmatprep.mubr.f32.mxu0 %v751
        %v753 = vand.u32 %v205, 4294901760
        %v754 = vsub.f32 %v205, %v753
        %755 = vmatmul.mubr.f32.gmra.mxu0 %v754
        %v756 = vpop.f32.mrf.mxu0
        %v757 = vadd.f32 %v588, %v756
        %v758 = vpop.f32.mrf.mxu0
        %v759 = vand.u32 %v208, 4294901760
        %v760 = vsub.f32 %v208, %v759
        %761 = vmatprep.mubr.f32.mxu0 %v760
        %v762 = vand.u32 %v207, 4294901760
        %v763 = vsub.f32 %v207, %v762
        %764 = vmatmul.mubr.f32.gmra.mxu0 %v763
        %v765 = vpop.f32.mrf.mxu0
        %v766 = vadd.f32 %v595, %v765
        %v767 = vpop.f32.mrf.mxu0
        %v768 = vand.u32 %v210, 4294901760
        %v769 = vsub.f32 %v210, %v768
        %770 = vmatprep.mubr.f32.mxu0 %v769
        %v771 = vand.u32 %v209, 4294901760
        %v772 = vsub.f32 %v209, %v771
        %773 = vmatmul.mubr.f32.gmra.mxu0 %v772
        %v774 = vpop.f32.mrf.mxu0
        %v775 = vadd.f32 %v602, %v774
        %v776 = vpop.f32.mrf.mxu0
        %777 = vdwg.mxu0
        %778 = vmatprep.subr.mxu0 0.0
        %779 = vmatpush1.msra.mxu0 1.0
        %780 = vmatprep.subr.mxu0 0.0
        %781 = vmatpush1.msra.mxu0 1.0
        %782 = vmatprep.subr.mxu0 0.0
        %783 = vmatpush1.msra.mxu0 1.0
        %784 = vmatprep.subr.mxu0 0.0
        %785 = vmatpush1.msra.mxu0 1.0
        %786 = vmatprep.subr.mxu0 0.0
        %787 = vmatpush1.msra.mxu0 1.0
        %788 = vmatprep.subr.mxu0 0.0
        %789 = vmatpush1.msra.mxu0 1.0
        %790 = vmatprep.subr.mxu0 0.0
        %791 = vmatpush1.msra.mxu0 1.0
        %792 = vmatprep.subr.mxu0 0.0
        %793 = vmatpush1.msra.mxu0 1.0
        %794 = vmatprep.subr.mxu0 0.0
        %795 = vmatpush1.msra.mxu0 1.0
        %796 = vmatprep.subr.mxu0 0.0
        %797 = vmatpush1.msra.mxu0 1.0
        %798 = vmatprep.subr.mxu0 0.0
        %799 = vmatpush1.msra.mxu0 1.0
        %800 = vmatprep.subr.mxu0 0.0
        %801 = vmatpush1.msra.mxu0 1.0
        %802 = vmatprep.subr.mxu0 0.0
        %803 = vmatpush1.msra.mxu0 1.0
        %804 = vmatprep.subr.mxu0 0.0
        %805 = vmatpush1.msra.mxu0 1.0
        %806 = vmatprep.subr.mxu0 0.0
        %807 = vmatpush1.msra.mxu0 1.0
        %808 = vmatprep.subr.mxu0 0.0
        %809 = vmatpush1.msra.mxu0 1.0
        %810 = vmatprep.subr.mxu0 0.0
        %811 = vmatpush2.msra.mxu0 1.0
        %812 = vmatprep.subr.mxu0 0.0
        %813 = vmatpush2.msra.mxu0 1.0
        %814 = vmatprep.subr.mxu0 0.0
        %815 = vmatpush2.msra.mxu0 1.0
        %816 = vmatprep.subr.mxu0 0.0
        %817 = vmatpush2.msra.mxu0 1.0
        %818 = vmatprep.subr.mxu0 0.0
        %819 = vmatpush2.msra.mxu0 1.0
        %820 = vmatprep.subr.mxu0 0.0
        %821 = vmatpush2.msra.mxu0 1.0
        %822 = vmatprep.subr.mxu0 0.0
        %823 = vmatpush2.msra.mxu0 1.0
        %824 = vmatprep.subr.mxu0 0.0
        %825 = vmatpush2.msra.mxu0 1.0
        %826 = vmatprep.subr.mxu0 0.0
        %827 = vmatpush2.msra.mxu0 1.0
        %828 = vmatprep.subr.mxu0 0.0
        %829 = vmatpush2.msra.mxu0 1.0
        %830 = vmatprep.subr.mxu0 0.0
        %831 = vmatpush2.msra.mxu0 1.0
        %832 = vmatprep.subr.mxu0 0.0
        %833 = vmatpush2.msra.mxu0 1.0
        %834 = vmatprep.subr.mxu0 0.0
        %835 = vmatpush2.msra.mxu0 1.0
        %836 = vmatprep.subr.mxu0 0.0
        %837 = vmatpush2.msra.mxu0 1.0
        %838 = vmatprep.subr.mxu0 0.0
        %839 = vmatpush2.msra.mxu0 1.0
        %840 = vmatprep.subr.mxu0 0.0
        %841 = vmatpush2.msra.mxu0 1.0
        %v842 = vand.u32 %v188, 4294901760
        %v843 = vsub.f32 %v188, %v842
        %v844 = vand.u32 %v843, 4294901760
        %845 = vmatprep.mubr.f32.mxu0 %v844
        %v846 = vand.u32 %v187, 4294901760
        %v847 = vsub.f32 %v187, %v846
        %v848 = vand.u32 %v847, 4294901760
        %849 = vmatmul.mubr.f32.gmra.mxu0 %v848
        %v850 = vpop.f32.mrf.mxu0
        %v851 = vadd.f32 %v676, %v850
        %v852 = vpop.f32.mrf.mxu0
        %v853 = vand.u32 %v190, 4294901760
        %v854 = vsub.f32 %v190, %v853
        %v855 = vand.u32 %v854, 4294901760
        %856 = vmatprep.mubr.f32.mxu0 %v855
        %v857 = vand.u32 %v189, 4294901760
        %v858 = vsub.f32 %v189, %v857
        %v859 = vand.u32 %v858, 4294901760
        %860 = vmatmul.mubr.f32.gmra.mxu0 %v859
        %v861 = vpop.f32.mrf.mxu0
        %v862 = vadd.f32 %v685, %v861
        %v863 = vpop.f32.mrf.mxu0
        %v864 = vand.u32 %v192, 4294901760
        %v865 = vsub.f32 %v192, %v864
        %v866 = vand.u32 %v865, 4294901760
        %867 = vmatprep.mubr.f32.mxu0 %v866
        %v868 = vand.u32 %v191, 4294901760
        %v869 = vsub.f32 %v191, %v868
        %v870 = vand.u32 %v869, 4294901760
        %871 = vmatmul.mubr.f32.gmra.mxu0 %v870
        %v872 = vpop.f32.mrf.mxu0
        %v873 = vadd.f32 %v694, %v872
        %v874 = vpop.f32.mrf.mxu0
        %v875 = vand.u32 %v194, 4294901760
        %v876 = vsub.f32 %v194, %v875
        %v877 = vand.u32 %v876, 4294901760
        %878 = vmatprep.mubr.f32.mxu0 %v877
        %v879 = vand.u32 %v193, 4294901760
        %v880 = vsub.f32 %v193, %v879
        %v881 = vand.u32 %v880, 4294901760
        %882 = vmatmul.mubr.f32.gmra.mxu0 %v881
        %v883 = vpop.f32.mrf.mxu0
        %v884 = vadd.f32 %v703, %v883
        %v885 = vpop.f32.mrf.mxu0
        %v886 = vand.u32 %v196, 4294901760
        %v887 = vsub.f32 %v196, %v886
        %v888 = vand.u32 %v887, 4294901760
        %889 = vmatprep.mubr.f32.mxu0 %v888
        %v890 = vand.u32 %v195, 4294901760
        %v891 = vsub.f32 %v195, %v890
        %v892 = vand.u32 %v891, 4294901760
        %893 = vmatmul.mubr.f32.gmra.mxu0 %v892
        %v894 = vpop.f32.mrf.mxu0
        %v895 = vadd.f32 %v712, %v894
        %v896 = vpop.f32.mrf.mxu0
        %v897 = vand.u32 %v198, 4294901760
        %v898 = vsub.f32 %v198, %v897
        %v899 = vand.u32 %v898, 4294901760
        %900 = vmatprep.mubr.f32.mxu0 %v899
        %v901 = vand.u32 %v197, 4294901760
        %v902 = vsub.f32 %v197, %v901
        %v903 = vand.u32 %v902, 4294901760
        %904 = vmatmul.mubr.f32.gmra.mxu0 %v903
        %v905 = vpop.f32.mrf.mxu0
        %v906 = vadd.f32 %v721, %v905
        %v907 = vpop.f32.mrf.mxu0
        %v908 = vand.u32 %v200, 4294901760
        %v909 = vsub.f32 %v200, %v908
        %v910 = vand.u32 %v909, 4294901760
        %911 = vmatprep.mubr.f32.mxu0 %v910
        %v912 = vand.u32 %v199, 4294901760
        %v913 = vsub.f32 %v199, %v912
        %v914 = vand.u32 %v913, 4294901760
        %915 = vmatmul.mubr.f32.gmra.mxu0 %v914
        %v916 = vpop.f32.mrf.mxu0
        %v917 = vadd.f32 %v730, %v916
        %v918 = vpop.f32.mrf.mxu0
        %v919 = vand.u32 %v202, 4294901760
        %v920 = vsub.f32 %v202, %v919
        %v921 = vand.u32 %v920, 4294901760
        %922 = vmatprep.mubr.f32.mxu0 %v921
        %v923 = vand.u32 %v201, 4294901760
        %v924 = vsub.f32 %v201, %v923
        %v925 = vand.u32 %v924, 4294901760
        %926 = vmatmul.mubr.f32.gmra.mxu0 %v925
        %v927 = vpop.f32.mrf.mxu0
        %v928 = vadd.f32 %v739, %v927
        %v929 = vpop.f32.mrf.mxu0
        %v930 = vand.u32 %v204, 4294901760
        %v931 = vsub.f32 %v204, %v930
        %v932 = vand.u32 %v931, 4294901760
        %933 = vmatprep.mubr.f32.mxu0 %v932
        %v934 = vand.u32 %v203, 4294901760
        %v935 = vsub.f32 %v203, %v934
        %v936 = vand.u32 %v935, 4294901760
        %937 = vmatmul.mubr.f32.gmra.mxu0 %v936
        %v938 = vpop.f32.mrf.mxu0
        %v939 = vadd.f32 %v748, %v938
        %v940 = vpop.f32.mrf.mxu0
        %v941 = vand.u32 %v206, 4294901760
        %v942 = vsub.f32 %v206, %v941
        %v943 = vand.u32 %v942, 4294901760
        %944 = vmatprep.mubr.f32.mxu0 %v943
        %v945 = vand.u32 %v205, 4294901760
        %v946 = vsub.f32 %v205, %v945
        %v947 = vand.u32 %v946, 4294901760
        %948 = vmatmul.mubr.f32.gmra.mxu0 %v947
        %v949 = vpop.f32.mrf.mxu0
        %v950 = vadd.f32 %v757, %v949
        %v951 = vpop.f32.mrf.mxu0
        %v952 = vand.u32 %v208, 4294901760
        %v953 = vsub.f32 %v208, %v952
        %v954 = vand.u32 %v953, 4294901760
        %955 = vmatprep.mubr.f32.mxu0 %v954
        %v956 = vand.u32 %v207, 4294901760
        %v957 = vsub.f32 %v207, %v956
        %v958 = vand.u32 %v957, 4294901760
        %959 = vmatmul.mubr.f32.gmra.mxu0 %v958
        %v960 = vpop.f32.mrf.mxu0
        %v961 = vadd.f32 %v766, %v960
        %v962 = vpop.f32.mrf.mxu0
        %v963 = vand.u32 %v210, 4294901760
        %v964 = vsub.f32 %v210, %v963
        %v965 = vand.u32 %v964, 4294901760
        %966 = vmatprep.mubr.f32.mxu0 %v965
        %v967 = vand.u32 %v209, 4294901760
        %v968 = vsub.f32 %v209, %v967
        %v969 = vand.u32 %v968, 4294901760
        %970 = vmatmul.mubr.f32.gmra.mxu0 %v969
        %v971 = vpop.f32.mrf.mxu0
        %v972 = vadd.f32 %v775, %v971
        %v973 = vpop.f32.mrf.mxu0
        %974 = vdwg.mxu0
        %975 = vmatprep.subr.mxu0 0.0
        %976 = vmatpush1.msra.mxu0 0.0
        %977 = vmatprep.subr.mxu0 0.0
        %978 = vmatpush1.msra.mxu0 0.0
        %979 = vmatprep.subr.mxu0 0.0
        %980 = vmatpush1.msra.mxu0 0.0
        %981 = vmatprep.subr.mxu0 0.0
        %982 = vmatpush1.msra.mxu0 0.0
        %983 = vmatprep.subr.mxu0 0.0
        %984 = vmatpush1.msra.mxu0 0.0
        %985 = vmatprep.subr.mxu0 0.0
        %986 = vmatpush1.msra.mxu0 0.0
        %987 = vmatprep.subr.mxu0 0.0
        %988 = vmatpush1.msra.mxu0 0.0
        %989 = vmatprep.subr.mxu0 0.0
        %990 = vmatpush1.msra.mxu0 0.0
        %991 = vmatprep.subr.mxu0 0.0
        %992 = vmatpush1.msra.mxu0 0.0
        %993 = vmatprep.subr.mxu0 0.0
        %994 = vmatpush1.msra.mxu0 0.0
        %995 = vmatprep.subr.mxu0 0.0
        %996 = vmatpush1.msra.mxu0 0.0
        %997 = vmatprep.subr.mxu0 0.0
        %998 = vmatpush1.msra.mxu0 0.0
        %999 = vmatprep.subr.mxu0 0.0
        %1000 = vmatpush1.msra.mxu0 0.0
        %1001 = vmatprep.subr.mxu0 0.0
        %1002 = vmatpush1.msra.mxu0 0.0
        %1003 = vmatprep.subr.mxu0 0.0
        %1004 = vmatpush1.msra.mxu0 0.0
        %1005 = vmatprep.subr.mxu0 0.0
        %1006 = vmatpush1.msra.mxu0 0.0
        %1007 = vmatprep.subr.mxu0 0.0
        %1008 = vmatpush2.msra.mxu0 0.0
        %1009 = vmatprep.subr.mxu0 0.0
        %1010 = vmatpush2.msra.mxu0 0.0
        %1011 = vmatprep.subr.mxu0 0.0
        %1012 = vmatpush2.msra.mxu0 0.0
        %1013 = vmatprep.subr.mxu0 0.0
        %1014 = vmatpush2.msra.mxu0 0.0
        %1015 = vmatprep.subr.mxu0 0.0
        %1016 = vmatpush2.msra.mxu0 0.0
        %1017 = vmatprep.subr.mxu0 0.0
        %1018 = vmatpush2.msra.mxu0 0.0
        %1019 = vmatprep.subr.mxu0 0.0
        %1020 = vmatpush2.msra.mxu0 0.0
        %1021 = vmatprep.subr.mxu0 0.0
        %1022 = vmatpush2.msra.mxu0 0.0
        %1023 = vmatprep.subr.mxu0 0.0
        %1024 = vmatpush2.msra.mxu0 0.0
        %1025 = vmatprep.subr.mxu0 0.0
        %1026 = vmatpush2.msra.mxu0 0.0
        %1027 = vmatprep.subr.mxu0 0.0
        %1028 = vmatpush2.msra.mxu0 0.0
        %1029 = vmatprep.subr.mxu0 0.0
        %1030 = vmatpush2.msra.mxu0 0.0
        %1031 = vmatprep.subr.mxu0 0.0
        %1032 = vmatpush2.msra.mxu0 0.0
        %1033 = vmatprep.subr.mxu0 0.0
        %1034 = vmatpush2.msra.mxu0 0.0
        %1035 = vmatprep.subr.mxu0 0.0
        %1036 = vmatpush2.msra.mxu0 0.0
        %1037 = vmatprep.subr.mxu0 0.0
        %1038 = vmatpush2.msra.mxu0 0.0
        %v1039 = vand.u32 %v188, 4294901760
        %1040 = vmatprep.mubr.f32.mxu0 %v1039
        %v1041 = vand.u32 %v187, 4294901760
        %1042 = vmatmul.mubr.f32.gmra.mxu0 %v1041
        %v1043 = vpop.f32.mrf.mxu0
        %v1044 = vadd.f32 %v851, %v1043
        %v1045 = vpop.f32.mrf.mxu0
        %v1046 = vand.u32 %v190, 4294901760
        %1047 = vmatprep.mubr.f32.mxu0 %v1046
        %v1048 = vand.u32 %v189, 4294901760
        %1049 = vmatmul.mubr.f32.gmra.mxu0 %v1048
        %v1050 = vpop.f32.mrf.mxu0
        %v1051 = vadd.f32 %v862, %v1050
        %v1052 = vpop.f32.mrf.mxu0
        %v1053 = vand.u32 %v192, 4294901760
        %1054 = vmatprep.mubr.f32.mxu0 %v1053
        %v1055 = vand.u32 %v191, 4294901760
        %1056 = vmatmul.mubr.f32.gmra.mxu0 %v1055
        %v1057 = vpop.f32.mrf.mxu0
        %v1058 = vadd.f32 %v873, %v1057
        %v1059 = vpop.f32.mrf.mxu0
        %v1060 = vand.u32 %v194, 4294901760
        %1061 = vmatprep.mubr.f32.mxu0 %v1060
        %v1062 = vand.u32 %v193, 4294901760
        %1063 = vmatmul.mubr.f32.gmra.mxu0 %v1062
        %v1064 = vpop.f32.mrf.mxu0
        %v1065 = vadd.f32 %v884, %v1064
        %v1066 = vpop.f32.mrf.mxu0
        %v1067 = vand.u32 %v196, 4294901760
        %1068 = vmatprep.mubr.f32.mxu0 %v1067
        %v1069 = vand.u32 %v195, 4294901760
        %1070 = vmatmul.mubr.f32.gmra.mxu0 %v1069
        %v1071 = vpop.f32.mrf.mxu0
        %v1072 = vadd.f32 %v895, %v1071
        %v1073 = vpop.f32.mrf.mxu0
        %v1074 = vand.u32 %v198, 4294901760
        %1075 = vmatprep.mubr.f32.mxu0 %v1074
        %v1076 = vand.u32 %v197, 4294901760
        %1077 = vmatmul.mubr.f32.gmra.mxu0 %v1076
        %v1078 = vpop.f32.mrf.mxu0
        %v1079 = vadd.f32 %v906, %v1078
        %v1080 = vpop.f32.mrf.mxu0
        %v1081 = vand.u32 %v200, 4294901760
        %1082 = vmatprep.mubr.f32.mxu0 %v1081
        %v1083 = vand.u32 %v199, 4294901760
        %1084 = vmatmul.mubr.f32.gmra.mxu0 %v1083
        %v1085 = vpop.f32.mrf.mxu0
        %v1086 = vadd.f32 %v917, %v1085
        %v1087 = vpop.f32.mrf.mxu0
        %v1088 = vand.u32 %v202, 4294901760
        %1089 = vmatprep.mubr.f32.mxu0 %v1088
        %v1090 = vand.u32 %v201, 4294901760
        %1091 = vmatmul.mubr.f32.gmra.mxu0 %v1090
        %v1092 = vpop.f32.mrf.mxu0
        %v1093 = vadd.f32 %v928, %v1092
        %v1094 = vpop.f32.mrf.mxu0
        %v1095 = vand.u32 %v204, 4294901760
        %1096 = vmatprep.mubr.f32.mxu0 %v1095
        %v1097 = vand.u32 %v203, 4294901760
        %1098 = vmatmul.mubr.f32.gmra.mxu0 %v1097
        %v1099 = vpop.f32.mrf.mxu0
        %v1100 = vadd.f32 %v939, %v1099
        %v1101 = vpop.f32.mrf.mxu0
        %v1102 = vand.u32 %v206, 4294901760
        %1103 = vmatprep.mubr.f32.mxu0 %v1102
        %v1104 = vand.u32 %v205, 4294901760
        %1105 = vmatmul.mubr.f32.gmra.mxu0 %v1104
        %v1106 = vpop.f32.mrf.mxu0
        %v1107 = vadd.f32 %v950, %v1106
        %v1108 = vpop.f32.mrf.mxu0
        %v1109 = vand.u32 %v208, 4294901760
        %1110 = vmatprep.mubr.f32.mxu0 %v1109
        %v1111 = vand.u32 %v207, 4294901760
        %1112 = vmatmul.mubr.f32.gmra.mxu0 %v1111
        %v1113 = vpop.f32.mrf.mxu0
        %v1114 = vadd.f32 %v961, %v1113
        %v1115 = vpop.f32.mrf.mxu0
        %v1116 = vand.u32 %v210, 4294901760
        %1117 = vmatprep.mubr.f32.mxu0 %v1116
        %v1118 = vand.u32 %v209, 4294901760
        %1119 = vmatmul.mubr.f32.gmra.mxu0 %v1118
        %v1120 = vpop.f32.mrf.mxu0
        %v1121 = vadd.f32 %v972, %v1120
        %v1122 = vpop.f32.mrf.mxu0
        %1123 = vdwg.mxu0
        %1124 = vmatprep.subr.mxu0 0.0
        %1125 = vmatpush1.msra.mxu0 1.0
        %1126 = vmatprep.subr.mxu0 0.0
        %1127 = vmatpush1.msra.mxu0 1.0
        %1128 = vmatprep.subr.mxu0 0.0
        %1129 = vmatpush1.msra.mxu0 1.0
        %1130 = vmatprep.subr.mxu0 0.0
        %1131 = vmatpush1.msra.mxu0 1.0
        %1132 = vmatprep.subr.mxu0 0.0
        %1133 = vmatpush1.msra.mxu0 1.0
        %1134 = vmatprep.subr.mxu0 0.0
        %1135 = vmatpush1.msra.mxu0 1.0
        %1136 = vmatprep.subr.mxu0 0.0
        %1137 = vmatpush1.msra.mxu0 1.0
        %1138 = vmatprep.subr.mxu0 0.0
        %1139 = vmatpush1.msra.mxu0 1.0
        %1140 = vmatprep.subr.mxu0 0.0
        %1141 = vmatpush1.msra.mxu0 1.0
        %1142 = vmatprep.subr.mxu0 0.0
        %1143 = vmatpush1.msra.mxu0 1.0
        %1144 = vmatprep.subr.mxu0 0.0
        %1145 = vmatpush1.msra.mxu0 1.0
        %1146 = vmatprep.subr.mxu0 0.0
        %1147 = vmatpush1.msra.mxu0 1.0
        %1148 = vmatprep.subr.mxu0 0.0
        %1149 = vmatpush1.msra.mxu0 1.0
        %1150 = vmatprep.subr.mxu0 0.0
        %1151 = vmatpush1.msra.mxu0 1.0
        %1152 = vmatprep.subr.mxu0 0.0
        %1153 = vmatpush1.msra.mxu0 1.0
        %1154 = vmatprep.subr.mxu0 0.0
        %1155 = vmatpush1.msra.mxu0 1.0
        %1156 = vmatprep.subr.mxu0 0.0
        %1157 = vmatpush2.msra.mxu0 1.0
        %1158 = vmatprep.subr.mxu0 0.0
        %1159 = vmatpush2.msra.mxu0 1.0
        %1160 = vmatprep.subr.mxu0 0.0
        %1161 = vmatpush2.msra.mxu0 1.0
        %1162 = vmatprep.subr.mxu0 0.0
        %1163 = vmatpush2.msra.mxu0 1.0
        %1164 = vmatprep.subr.mxu0 0.0
        %1165 = vmatpush2.msra.mxu0 1.0
        %1166 = vmatprep.subr.mxu0 0.0
        %1167 = vmatpush2.msra.mxu0 1.0
        %1168 = vmatprep.subr.mxu0 0.0
        %1169 = vmatpush2.msra.mxu0 1.0
        %1170 = vmatprep.subr.mxu0 0.0
        %1171 = vmatpush2.msra.mxu0 1.0
        %1172 = vmatprep.subr.mxu0 0.0
        %1173 = vmatpush2.msra.mxu0 1.0
        %1174 = vmatprep.subr.mxu0 0.0
        %1175 = vmatpush2.msra.mxu0 1.0
        %1176 = vmatprep.subr.mxu0 0.0
        %1177 = vmatpush2.msra.mxu0 1.0
        %1178 = vmatprep.subr.mxu0 0.0
        %1179 = vmatpush2.msra.mxu0 1.0
        %1180 = vmatprep.subr.mxu0 0.0
        %1181 = vmatpush2.msra.mxu0 1.0
        %1182 = vmatprep.subr.mxu0 0.0
        %1183 = vmatpush2.msra.mxu0 1.0
        %1184 = vmatprep.subr.mxu0 0.0
        %1185 = vmatpush2.msra.mxu0 1.0
        %1186 = vmatprep.subr.mxu0 0.0
        %1187 = vmatpush2.msra.mxu0 1.0
        %v1188 = vand.u32 %v188, 4294901760
        %1189 = vmatprep.mubr.f32.mxu0 %v1188
        %v1190 = vand.u32 %v187, 4294901760
        %1191 = vmatmul.mubr.f32.gmra.mxu0 %v1190
        %v1192 = vpop.f32.mrf.mxu0
        %v1193 = vadd.f32 %v1044, %v1192
        %v1194 = vpop.f32.mrf.mxu0
        %v1195 = vand.u32 %v190, 4294901760
        %1196 = vmatprep.mubr.f32.mxu0 %v1195
        %v1197 = vand.u32 %v189, 4294901760
        %1198 = vmatmul.mubr.f32.gmra.mxu0 %v1197
        %v1199 = vpop.f32.mrf.mxu0
        %v1200 = vadd.f32 %v1051, %v1199
        %v1201 = vpop.f32.mrf.mxu0
        %v1202 = vand.u32 %v192, 4294901760
        %1203 = vmatprep.mubr.f32.mxu0 %v1202
        %v1204 = vand.u32 %v191, 4294901760
        %1205 = vmatmul.mubr.f32.gmra.mxu0 %v1204
        %v1206 = vpop.f32.mrf.mxu0
        %v1207 = vadd.f32 %v1058, %v1206
        %v1208 = vpop.f32.mrf.mxu0
        %v1209 = vand.u32 %v194, 4294901760
        %1210 = vmatprep.mubr.f32.mxu0 %v1209
        %v1211 = vand.u32 %v193, 4294901760
        %1212 = vmatmul.mubr.f32.gmra.mxu0 %v1211
        %v1213 = vpop.f32.mrf.mxu0
        %v1214 = vadd.f32 %v1065, %v1213
        %v1215 = vpop.f32.mrf.mxu0
        %v1216 = vand.u32 %v196, 4294901760
        %1217 = vmatprep.mubr.f32.mxu0 %v1216
        %v1218 = vand.u32 %v195, 4294901760
        %1219 = vmatmul.mubr.f32.gmra.mxu0 %v1218
        %v1220 = vpop.f32.mrf.mxu0
        %v1221 = vadd.f32 %v1072, %v1220
        %v1222 = vpop.f32.mrf.mxu0
        %v1223 = vand.u32 %v198, 4294901760
        %1224 = vmatprep.mubr.f32.mxu0 %v1223
        %v1225 = vand.u32 %v197, 4294901760
        %1226 = vmatmul.mubr.f32.gmra.mxu0 %v1225
        %v1227 = vpop.f32.mrf.mxu0
        %v1228 = vadd.f32 %v1079, %v1227
        %v1229 = vpop.f32.mrf.mxu0
        %v1230 = vand.u32 %v200, 4294901760
        %1231 = vmatprep.mubr.f32.mxu0 %v1230
        %v1232 = vand.u32 %v199, 4294901760
        %1233 = vmatmul.mubr.f32.gmra.mxu0 %v1232
        %v1234 = vpop.f32.mrf.mxu0
        %v1235 = vadd.f32 %v1086, %v1234
        %v1236 = vpop.f32.mrf.mxu0
        %v1237 = vand.u32 %v202, 4294901760
        %1238 = vmatprep.mubr.f32.mxu0 %v1237
        %v1239 = vand.u32 %v201, 4294901760
        %1240 = vmatmul.mubr.f32.gmra.mxu0 %v1239
        %v1241 = vpop.f32.mrf.mxu0
        %v1242 = vadd.f32 %v1093, %v1241
        %v1243 = vpop.f32.mrf.mxu0
        %v1244 = vand.u32 %v204, 4294901760
        %1245 = vmatprep.mubr.f32.mxu0 %v1244
        %v1246 = vand.u32 %v203, 4294901760
        %1247 = vmatmul.mubr.f32.gmra.mxu0 %v1246
        %v1248 = vpop.f32.mrf.mxu0
        %v1249 = vadd.f32 %v1100, %v1248
        %v1250 = vpop.f32.mrf.mxu0
        %v1251 = vand.u32 %v206, 4294901760
        %1252 = vmatprep.mubr.f32.mxu0 %v1251
        %v1253 = vand.u32 %v205, 4294901760
        %1254 = vmatmul.mubr.f32.gmra.mxu0 %v1253
        %v1255 = vpop.f32.mrf.mxu0
        %v1256 = vadd.f32 %v1107, %v1255
        %v1257 = vpop.f32.mrf.mxu0
        %v1258 = vand.u32 %v208, 4294901760
        %1259 = vmatprep.mubr.f32.mxu0 %v1258
        %v1260 = vand.u32 %v207, 4294901760
        %1261 = vmatmul.mubr.f32.gmra.mxu0 %v1260
        %v1262 = vpop.f32.mrf.mxu0
        %v1263 = vadd.f32 %v1114, %v1262
        %v1264 = vpop.f32.mrf.mxu0
        %v1265 = vand.u32 %v210, 4294901760
        %1266 = vmatprep.mubr.f32.mxu0 %v1265
        %v1267 = vand.u32 %v209, 4294901760
        %1268 = vmatmul.mubr.f32.gmra.mxu0 %v1267
        %v1269 = vpop.f32.mrf.mxu0
        %v1270 = vadd.f32 %v1121, %v1269
        %v1271 = vpop.f32.mrf.mxu0
        %1272 = vdwg.mxu0
        %v1273 = vmul.f32 %v187, %v187
        %v1274 = vmul.f32 %v188, %v188
        %v1275 = vmul.f32 %v189, %v189
        %v1276 = vmul.f32 %v190, %v190
        %v1277 = vmul.f32 %v191, %v191
        %v1278 = vmul.f32 %v192, %v192
        %v1279 = vmul.f32 %v193, %v193
        %v1280 = vmul.f32 %v194, %v194
        %v1281 = vmul.f32 %v195, %v195
        %v1282 = vmul.f32 %v196, %v196
        %v1283 = vmul.f32 %v197, %v197
        %v1284 = vmul.f32 %v198, %v198
        %v1285 = vmul.f32 %v199, %v199
        %v1286 = vmul.f32 %v200, %v200
        %v1287 = vmul.f32 %v201, %v201
        %v1288 = vmul.f32 %v202, %v202
        %v1289 = vmul.f32 %v203, %v203
        %v1290 = vmul.f32 %v204, %v204
        %v1291 = vmul.f32 %v205, %v205
        %v1292 = vmul.f32 %v206, %v206
        %v1293 = vmul.f32 %v207, %v207
        %v1294 = vmul.f32 %v208, %v208
        %v1295 = vmul.f32 %v209, %v209
        %v1296 = vmul.f32 %v210, %v210
        %1297 = vmatprep.subr.mxu0 0.0
        %1298 = vmatpush1.msra.mxu0 1.0
        %1299 = vmatprep.subr.mxu0 0.0
        %1300 = vmatpush1.msra.mxu0 1.0
        %1301 = vmatprep.subr.mxu0 0.0
        %1302 = vmatpush1.msra.mxu0 1.0
        %1303 = vmatprep.subr.mxu0 0.0
        %1304 = vmatpush1.msra.mxu0 1.0
        %1305 = vmatprep.subr.mxu0 0.0
        %1306 = vmatpush1.msra.mxu0 1.0
        %1307 = vmatprep.subr.mxu0 0.0
        %1308 = vmatpush1.msra.mxu0 1.0
        %1309 = vmatprep.subr.mxu0 0.0
        %1310 = vmatpush1.msra.mxu0 1.0
        %1311 = vmatprep.subr.mxu0 0.0
        %1312 = vmatpush1.msra.mxu0 1.0
        %1313 = vmatprep.subr.mxu0 0.0
        %1314 = vmatpush1.msra.mxu0 1.0
        %1315 = vmatprep.subr.mxu0 0.0
        %1316 = vmatpush1.msra.mxu0 1.0
        %1317 = vmatprep.subr.mxu0 0.0
        %1318 = vmatpush1.msra.mxu0 1.0
        %1319 = vmatprep.subr.mxu0 0.0
        %1320 = vmatpush1.msra.mxu0 1.0
        %1321 = vmatprep.subr.mxu0 0.0
        %1322 = vmatpush1.msra.mxu0 1.0
        %1323 = vmatprep.subr.mxu0 0.0
        %1324 = vmatpush1.msra.mxu0 1.0
        %1325 = vmatprep.subr.mxu0 0.0
        %1326 = vmatpush1.msra.mxu0 1.0
        %1327 = vmatprep.subr.mxu0 0.0
        %1328 = vmatpush1.msra.mxu0 1.0
        %1329 = vmatprep.subr.mxu0 0.0
        %1330 = vmatpush2.msra.mxu0 1.0
        %1331 = vmatprep.subr.mxu0 0.0
        %1332 = vmatpush2.msra.mxu0 1.0
        %1333 = vmatprep.subr.mxu0 0.0
        %1334 = vmatpush2.msra.mxu0 1.0
        %1335 = vmatprep.subr.mxu0 0.0
        %1336 = vmatpush2.msra.mxu0 1.0
        %1337 = vmatprep.subr.mxu0 0.0
        %1338 = vmatpush2.msra.mxu0 1.0
        %1339 = vmatprep.subr.mxu0 0.0
        %1340 = vmatpush2.msra.mxu0 1.0
        %1341 = vmatprep.subr.mxu0 0.0
        %1342 = vmatpush2.msra.mxu0 1.0
        %1343 = vmatprep.subr.mxu0 0.0
        %1344 = vmatpush2.msra.mxu0 1.0
        %1345 = vmatprep.subr.mxu0 0.0
        %1346 = vmatpush2.msra.mxu0 1.0
        %1347 = vmatprep.subr.mxu0 0.0
        %1348 = vmatpush2.msra.mxu0 1.0
        %1349 = vmatprep.subr.mxu0 0.0
        %1350 = vmatpush2.msra.mxu0 1.0
        %1351 = vmatprep.subr.mxu0 0.0
        %1352 = vmatpush2.msra.mxu0 1.0
        %1353 = vmatprep.subr.mxu0 0.0
        %1354 = vmatpush2.msra.mxu0 1.0
        %1355 = vmatprep.subr.mxu0 0.0
        %1356 = vmatpush2.msra.mxu0 1.0
        %1357 = vmatprep.subr.mxu0 0.0
        %1358 = vmatpush2.msra.mxu0 1.0
        %1359 = vmatprep.subr.mxu0 0.0
        %1360 = vmatpush2.msra.mxu0 1.0
        %v1361 = vand.u32 %v1274, 4294901760
        %v1362 = vsub.f32 %v1274, %v1361
        %v1363 = vand.u32 %v1362, 4294901760
        %v1364 = vsub.f32 %v1362, %v1363
        %v1365 = vand.u32 %v1364, 4294901760
        %1366 = vmatprep.mubr.f32.mxu0 %v1365
        %v1367 = vand.u32 %v1273, 4294901760
        %v1368 = vsub.f32 %v1273, %v1367
        %v1369 = vand.u32 %v1368, 4294901760
        %v1370 = vsub.f32 %v1368, %v1369
        %v1371 = vand.u32 %v1370, 4294901760
        %1372 = vmatmul.mubr.f32.gmra.mxu0 %v1371
        %v1373 = vpop.f32.mrf.mxu0
        %v1374 = vadd.f32 0.0, %v1373
        %v1375 = vpop.f32.mrf.mxu0
        %v1376 = vand.u32 %v1276, 4294901760
        %v1377 = vsub.f32 %v1276, %v1376
        %v1378 = vand.u32 %v1377, 4294901760
        %v1379 = vsub.f32 %v1377, %v1378
        %v1380 = vand.u32 %v1379, 4294901760
        %1381 = vmatprep.mubr.f32.mxu0 %v1380
        %v1382 = vand.u32 %v1275, 4294901760
        %v1383 = vsub.f32 %v1275, %v1382
        %v1384 = vand.u32 %v1383, 4294901760
        %v1385 = vsub.f32 %v1383, %v1384
        %v1386 = vand.u32 %v1385, 4294901760
        %1387 = vmatmul.mubr.f32.gmra.mxu0 %v1386
        %v1388 = vpop.f32.mrf.mxu0
        %v1389 = vadd.f32 0.0, %v1388
        %v1390 = vpop.f32.mrf.mxu0
        %v1391 = vand.u32 %v1278, 4294901760
        %v1392 = vsub.f32 %v1278, %v1391
        %v1393 = vand.u32 %v1392, 4294901760
        %v1394 = vsub.f32 %v1392, %v1393
        %v1395 = vand.u32 %v1394, 4294901760
        %1396 = vmatprep.mubr.f32.mxu0 %v1395
        %v1397 = vand.u32 %v1277, 4294901760
        %v1398 = vsub.f32 %v1277, %v1397
        %v1399 = vand.u32 %v1398, 4294901760
        %v1400 = vsub.f32 %v1398, %v1399
        %v1401 = vand.u32 %v1400, 4294901760
        %1402 = vmatmul.mubr.f32.gmra.mxu0 %v1401
        %v1403 = vpop.f32.mrf.mxu0
        %v1404 = vadd.f32 0.0, %v1403
        %v1405 = vpop.f32.mrf.mxu0
        %v1406 = vand.u32 %v1280, 4294901760
        %v1407 = vsub.f32 %v1280, %v1406
        %v1408 = vand.u32 %v1407, 4294901760
        %v1409 = vsub.f32 %v1407, %v1408
        %v1410 = vand.u32 %v1409, 4294901760
        %1411 = vmatprep.mubr.f32.mxu0 %v1410
        %v1412 = vand.u32 %v1279, 4294901760
        %v1413 = vsub.f32 %v1279, %v1412
        %v1414 = vand.u32 %v1413, 4294901760
        %v1415 = vsub.f32 %v1413, %v1414
        %v1416 = vand.u32 %v1415, 4294901760
        %1417 = vmatmul.mubr.f32.gmra.mxu0 %v1416
        %v1418 = vpop.f32.mrf.mxu0
        %v1419 = vadd.f32 0.0, %v1418
        %v1420 = vpop.f32.mrf.mxu0
        %v1421 = vand.u32 %v1282, 4294901760
        %v1422 = vsub.f32 %v1282, %v1421
        %v1423 = vand.u32 %v1422, 4294901760
        %v1424 = vsub.f32 %v1422, %v1423
        %v1425 = vand.u32 %v1424, 4294901760
        %1426 = vmatprep.mubr.f32.mxu0 %v1425
        %v1427 = vand.u32 %v1281, 4294901760
        %v1428 = vsub.f32 %v1281, %v1427
        %v1429 = vand.u32 %v1428, 4294901760
        %v1430 = vsub.f32 %v1428, %v1429
        %v1431 = vand.u32 %v1430, 4294901760
        %1432 = vmatmul.mubr.f32.gmra.mxu0 %v1431
        %v1433 = vpop.f32.mrf.mxu0
        %v1434 = vadd.f32 0.0, %v1433
        %v1435 = vpop.f32.mrf.mxu0
        %v1436 = vand.u32 %v1284, 4294901760
        %v1437 = vsub.f32 %v1284, %v1436
        %v1438 = vand.u32 %v1437, 4294901760
        %v1439 = vsub.f32 %v1437, %v1438
        %v1440 = vand.u32 %v1439, 4294901760
        %1441 = vmatprep.mubr.f32.mxu0 %v1440
        %v1442 = vand.u32 %v1283, 4294901760
        %v1443 = vsub.f32 %v1283, %v1442
        %v1444 = vand.u32 %v1443, 4294901760
        %v1445 = vsub.f32 %v1443, %v1444
        %v1446 = vand.u32 %v1445, 4294901760
        %1447 = vmatmul.mubr.f32.gmra.mxu0 %v1446
        %v1448 = vpop.f32.mrf.mxu0
        %v1449 = vadd.f32 0.0, %v1448
        %v1450 = vpop.f32.mrf.mxu0
        %v1451 = vand.u32 %v1286, 4294901760
        %v1452 = vsub.f32 %v1286, %v1451
        %v1453 = vand.u32 %v1452, 4294901760
        %v1454 = vsub.f32 %v1452, %v1453
        %v1455 = vand.u32 %v1454, 4294901760
        %1456 = vmatprep.mubr.f32.mxu0 %v1455
        %v1457 = vand.u32 %v1285, 4294901760
        %v1458 = vsub.f32 %v1285, %v1457
        %v1459 = vand.u32 %v1458, 4294901760
        %v1460 = vsub.f32 %v1458, %v1459
        %v1461 = vand.u32 %v1460, 4294901760
        %1462 = vmatmul.mubr.f32.gmra.mxu0 %v1461
        %v1463 = vpop.f32.mrf.mxu0
        %v1464 = vadd.f32 0.0, %v1463
        %v1465 = vpop.f32.mrf.mxu0
        %v1466 = vand.u32 %v1288, 4294901760
        %v1467 = vsub.f32 %v1288, %v1466
        %v1468 = vand.u32 %v1467, 4294901760
        %v1469 = vsub.f32 %v1467, %v1468
        %v1470 = vand.u32 %v1469, 4294901760
        %1471 = vmatprep.mubr.f32.mxu0 %v1470
        %v1472 = vand.u32 %v1287, 4294901760
        %v1473 = vsub.f32 %v1287, %v1472
        %v1474 = vand.u32 %v1473, 4294901760
        %v1475 = vsub.f32 %v1473, %v1474
        %v1476 = vand.u32 %v1475, 4294901760
        %1477 = vmatmul.mubr.f32.gmra.mxu0 %v1476
        %v1478 = vpop.f32.mrf.mxu0
        %v1479 = vadd.f32 0.0, %v1478
        %v1480 = vpop.f32.mrf.mxu0
        %v1481 = vand.u32 %v1290, 4294901760
        %v1482 = vsub.f32 %v1290, %v1481
        %v1483 = vand.u32 %v1482, 4294901760
        %v1484 = vsub.f32 %v1482, %v1483
        %v1485 = vand.u32 %v1484, 4294901760
        %1486 = vmatprep.mubr.f32.mxu0 %v1485
        %v1487 = vand.u32 %v1289, 4294901760
        %v1488 = vsub.f32 %v1289, %v1487
        %v1489 = vand.u32 %v1488, 4294901760
        %v1490 = vsub.f32 %v1488, %v1489
        %v1491 = vand.u32 %v1490, 4294901760
        %1492 = vmatmul.mubr.f32.gmra.mxu0 %v1491
        %v1493 = vpop.f32.mrf.mxu0
        %v1494 = vadd.f32 0.0, %v1493
        %v1495 = vpop.f32.mrf.mxu0
        %v1496 = vand.u32 %v1292, 4294901760
        %v1497 = vsub.f32 %v1292, %v1496
        %v1498 = vand.u32 %v1497, 4294901760
        %v1499 = vsub.f32 %v1497, %v1498
        %v1500 = vand.u32 %v1499, 4294901760
        %1501 = vmatprep.mubr.f32.mxu0 %v1500
        %v1502 = vand.u32 %v1291, 4294901760
        %v1503 = vsub.f32 %v1291, %v1502
        %v1504 = vand.u32 %v1503, 4294901760
        %v1505 = vsub.f32 %v1503, %v1504
        %v1506 = vand.u32 %v1505, 4294901760
        %1507 = vmatmul.mubr.f32.gmra.mxu0 %v1506
        %v1508 = vpop.f32.mrf.mxu0
        %v1509 = vadd.f32 0.0, %v1508
        %v1510 = vpop.f32.mrf.mxu0
        %v1511 = vand.u32 %v1294, 4294901760
        %v1512 = vsub.f32 %v1294, %v1511
        %v1513 = vand.u32 %v1512, 4294901760
        %v1514 = vsub.f32 %v1512, %v1513
        %v1515 = vand.u32 %v1514, 4294901760
        %1516 = vmatprep.mubr.f32.mxu0 %v1515
        %v1517 = vand.u32 %v1293, 4294901760
        %v1518 = vsub.f32 %v1293, %v1517
        %v1519 = vand.u32 %v1518, 4294901760
        %v1520 = vsub.f32 %v1518, %v1519
        %v1521 = vand.u32 %v1520, 4294901760
        %1522 = vmatmul.mubr.f32.gmra.mxu0 %v1521
        %v1523 = vpop.f32.mrf.mxu0
        %v1524 = vadd.f32 0.0, %v1523
        %v1525 = vpop.f32.mrf.mxu0
        %v1526 = vand.u32 %v1296, 4294901760
        %v1527 = vsub.f32 %v1296, %v1526
        %v1528 = vand.u32 %v1527, 4294901760
        %v1529 = vsub.f32 %v1527, %v1528
        %v1530 = vand.u32 %v1529, 4294901760
        %1531 = vmatprep.mubr.f32.mxu0 %v1530
        %v1532 = vand.u32 %v1295, 4294901760
        %v1533 = vsub.f32 %v1295, %v1532
        %v1534 = vand.u32 %v1533, 4294901760
        %v1535 = vsub.f32 %v1533, %v1534
        %v1536 = vand.u32 %v1535, 4294901760
        %1537 = vmatmul.mubr.f32.gmra.mxu0 %v1536
        %v1538 = vpop.f32.mrf.mxu0
        %v1539 = vadd.f32 0.0, %v1538
        %v1540 = vpop.f32.mrf.mxu0
        %1541 = vdwg.mxu0
        %1542 = vmatprep.subr.mxu0 0.0
        %1543 = vmatpush1.msra.mxu0 0.0
        %1544 = vmatprep.subr.mxu0 0.0
        %1545 = vmatpush1.msra.mxu0 0.0
        %1546 = vmatprep.subr.mxu0 0.0
        %1547 = vmatpush1.msra.mxu0 0.0
        %1548 = vmatprep.subr.mxu0 0.0
        %1549 = vmatpush1.msra.mxu0 0.0
        %1550 = vmatprep.subr.mxu0 0.0
        %1551 = vmatpush1.msra.mxu0 0.0
        %1552 = vmatprep.subr.mxu0 0.0
        %1553 = vmatpush1.msra.mxu0 0.0
        %1554 = vmatprep.subr.mxu0 0.0
        %1555 = vmatpush1.msra.mxu0 0.0
        %1556 = vmatprep.subr.mxu0 0.0
        %1557 = vmatpush1.msra.mxu0 0.0
        %1558 = vmatprep.subr.mxu0 0.0
        %1559 = vmatpush1.msra.mxu0 0.0
        %1560 = vmatprep.subr.mxu0 0.0
        %1561 = vmatpush1.msra.mxu0 0.0
        %1562 = vmatprep.subr.mxu0 0.0
        %1563 = vmatpush1.msra.mxu0 0.0
        %1564 = vmatprep.subr.mxu0 0.0
        %1565 = vmatpush1.msra.mxu0 0.0
        %1566 = vmatprep.subr.mxu0 0.0
        %1567 = vmatpush1.msra.mxu0 0.0
        %1568 = vmatprep.subr.mxu0 0.0
        %1569 = vmatpush1.msra.mxu0 0.0
        %1570 = vmatprep.subr.mxu0 0.0
        %1571 = vmatpush1.msra.mxu0 0.0
        %1572 = vmatprep.subr.mxu0 0.0
        %1573 = vmatpush1.msra.mxu0 0.0
        %1574 = vmatprep.subr.mxu0 0.0
        %1575 = vmatpush2.msra.mxu0 0.0
        %1576 = vmatprep.subr.mxu0 0.0
        %1577 = vmatpush2.msra.mxu0 0.0
        %1578 = vmatprep.subr.mxu0 0.0
        %1579 = vmatpush2.msra.mxu0 0.0
        %1580 = vmatprep.subr.mxu0 0.0
        %1581 = vmatpush2.msra.mxu0 0.0
        %1582 = vmatprep.subr.mxu0 0.0
        %1583 = vmatpush2.msra.mxu0 0.0
        %1584 = vmatprep.subr.mxu0 0.0
        %1585 = vmatpush2.msra.mxu0 0.0
        %1586 = vmatprep.subr.mxu0 0.0
        %1587 = vmatpush2.msra.mxu0 0.0
        %1588 = vmatprep.subr.mxu0 0.0
        %1589 = vmatpush2.msra.mxu0 0.0
        %1590 = vmatprep.subr.mxu0 0.0
        %1591 = vmatpush2.msra.mxu0 0.0
        %1592 = vmatprep.subr.mxu0 0.0
        %1593 = vmatpush2.msra.mxu0 0.0
        %1594 = vmatprep.subr.mxu0 0.0
        %1595 = vmatpush2.msra.mxu0 0.0
        %1596 = vmatprep.subr.mxu0 0.0
        %1597 = vmatpush2.msra.mxu0 0.0
        %1598 = vmatprep.subr.mxu0 0.0
        %1599 = vmatpush2.msra.mxu0 0.0
        %1600 = vmatprep.subr.mxu0 0.0
        %1601 = vmatpush2.msra.mxu0 0.0
        %1602 = vmatprep.subr.mxu0 0.0
        %1603 = vmatpush2.msra.mxu0 0.0
        %1604 = vmatprep.subr.mxu0 0.0
        %1605 = vmatpush2.msra.mxu0 0.0
        %v1606 = vand.u32 %v1274, 4294901760
        %1607 = vmatprep.mubr.f32.mxu0 %v1606
        %v1608 = vand.u32 %v1273, 4294901760
        %1609 = vmatmul.mubr.f32.gmra.mxu0 %v1608
        %v1610 = vpop.f32.mrf.mxu0
        %v1611 = vadd.f32 %v1374, %v1610
        %v1612 = vpop.f32.mrf.mxu0
        %v1613 = vand.u32 %v1276, 4294901760
        %1614 = vmatprep.mubr.f32.mxu0 %v1613
        %v1615 = vand.u32 %v1275, 4294901760
        %1616 = vmatmul.mubr.f32.gmra.mxu0 %v1615
        %v1617 = vpop.f32.mrf.mxu0
        %v1618 = vadd.f32 %v1389, %v1617
        %v1619 = vpop.f32.mrf.mxu0
        %v1620 = vand.u32 %v1278, 4294901760
        %1621 = vmatprep.mubr.f32.mxu0 %v1620
        %v1622 = vand.u32 %v1277, 4294901760
        %1623 = vmatmul.mubr.f32.gmra.mxu0 %v1622
        %v1624 = vpop.f32.mrf.mxu0
        %v1625 = vadd.f32 %v1404, %v1624
        %v1626 = vpop.f32.mrf.mxu0
        %v1627 = vand.u32 %v1280, 4294901760
        %1628 = vmatprep.mubr.f32.mxu0 %v1627
        %v1629 = vand.u32 %v1279, 4294901760
        %1630 = vmatmul.mubr.f32.gmra.mxu0 %v1629
        %v1631 = vpop.f32.mrf.mxu0
        %v1632 = vadd.f32 %v1419, %v1631
        %v1633 = vpop.f32.mrf.mxu0
        %v1634 = vand.u32 %v1282, 4294901760
        %1635 = vmatprep.mubr.f32.mxu0 %v1634
        %v1636 = vand.u32 %v1281, 4294901760
        %1637 = vmatmul.mubr.f32.gmra.mxu0 %v1636
        %v1638 = vpop.f32.mrf.mxu0
        %v1639 = vadd.f32 %v1434, %v1638
        %v1640 = vpop.f32.mrf.mxu0
        %v1641 = vand.u32 %v1284, 4294901760
        %1642 = vmatprep.mubr.f32.mxu0 %v1641
        %v1643 = vand.u32 %v1283, 4294901760
        %1644 = vmatmul.mubr.f32.gmra.mxu0 %v1643
        %v1645 = vpop.f32.mrf.mxu0
        %v1646 = vadd.f32 %v1449, %v1645
        %v1647 = vpop.f32.mrf.mxu0
        %v1648 = vand.u32 %v1286, 4294901760
        %1649 = vmatprep.mubr.f32.mxu0 %v1648
        %v1650 = vand.u32 %v1285, 4294901760
        %1651 = vmatmul.mubr.f32.gmra.mxu0 %v1650
        %v1652 = vpop.f32.mrf.mxu0
        %v1653 = vadd.f32 %v1464, %v1652
        %v1654 = vpop.f32.mrf.mxu0
        %v1655 = vand.u32 %v1288, 4294901760
        %1656 = vmatprep.mubr.f32.mxu0 %v1655
        %v1657 = vand.u32 %v1287, 4294901760
        %1658 = vmatmul.mubr.f32.gmra.mxu0 %v1657
        %v1659 = vpop.f32.mrf.mxu0
        %v1660 = vadd.f32 %v1479, %v1659
        %v1661 = vpop.f32.mrf.mxu0
        %v1662 = vand.u32 %v1290, 4294901760
        %1663 = vmatprep.mubr.f32.mxu0 %v1662
        %v1664 = vand.u32 %v1289, 4294901760
        %1665 = vmatmul.mubr.f32.gmra.mxu0 %v1664
        %v1666 = vpop.f32.mrf.mxu0
        %v1667 = vadd.f32 %v1494, %v1666
        %v1668 = vpop.f32.mrf.mxu0
        %v1669 = vand.u32 %v1292, 4294901760
        %1670 = vmatprep.mubr.f32.mxu0 %v1669
        %v1671 = vand.u32 %v1291, 4294901760
        %1672 = vmatmul.mubr.f32.gmra.mxu0 %v1671
        %v1673 = vpop.f32.mrf.mxu0
        %v1674 = vadd.f32 %v1509, %v1673
        %v1675 = vpop.f32.mrf.mxu0
        %v1676 = vand.u32 %v1294, 4294901760
        %1677 = vmatprep.mubr.f32.mxu0 %v1676
        %v1678 = vand.u32 %v1293, 4294901760
        %1679 = vmatmul.mubr.f32.gmra.mxu0 %v1678
        %v1680 = vpop.f32.mrf.mxu0
        %v1681 = vadd.f32 %v1524, %v1680
        %v1682 = vpop.f32.mrf.mxu0
        %v1683 = vand.u32 %v1296, 4294901760
        %1684 = vmatprep.mubr.f32.mxu0 %v1683
        %v1685 = vand.u32 %v1295, 4294901760
        %1686 = vmatmul.mubr.f32.gmra.mxu0 %v1685
        %v1687 = vpop.f32.mrf.mxu0
        %v1688 = vadd.f32 %v1539, %v1687
        %v1689 = vpop.f32.mrf.mxu0
        %1690 = vdwg.mxu0
        %1691 = vmatprep.subr.mxu0 0.0
        %1692 = vmatpush1.msra.mxu0 0.0
        %1693 = vmatprep.subr.mxu0 0.0
        %1694 = vmatpush1.msra.mxu0 0.0
        %1695 = vmatprep.subr.mxu0 0.0
        %1696 = vmatpush1.msra.mxu0 0.0
        %1697 = vmatprep.subr.mxu0 0.0
        %1698 = vmatpush1.msra.mxu0 0.0
        %1699 = vmatprep.subr.mxu0 0.0
        %1700 = vmatpush1.msra.mxu0 0.0
        %1701 = vmatprep.subr.mxu0 0.0
        %1702 = vmatpush1.msra.mxu0 0.0
        %1703 = vmatprep.subr.mxu0 0.0
        %1704 = vmatpush1.msra.mxu0 0.0
        %1705 = vmatprep.subr.mxu0 0.0
        %1706 = vmatpush1.msra.mxu0 0.0
        %1707 = vmatprep.subr.mxu0 0.0
        %1708 = vmatpush1.msra.mxu0 0.0
        %1709 = vmatprep.subr.mxu0 0.0
        %1710 = vmatpush1.msra.mxu0 0.0
        %1711 = vmatprep.subr.mxu0 0.0
        %1712 = vmatpush1.msra.mxu0 0.0
        %1713 = vmatprep.subr.mxu0 0.0
        %1714 = vmatpush1.msra.mxu0 0.0
        %1715 = vmatprep.subr.mxu0 0.0
        %1716 = vmatpush1.msra.mxu0 0.0
        %1717 = vmatprep.subr.mxu0 0.0
        %1718 = vmatpush1.msra.mxu0 0.0
        %1719 = vmatprep.subr.mxu0 0.0
        %1720 = vmatpush1.msra.mxu0 0.0
        %1721 = vmatprep.subr.mxu0 0.0
        %1722 = vmatpush1.msra.mxu0 0.0
        %1723 = vmatprep.subr.mxu0 0.0
        %1724 = vmatpush2.msra.mxu0 0.0
        %1725 = vmatprep.subr.mxu0 0.0
        %1726 = vmatpush2.msra.mxu0 0.0
        %1727 = vmatprep.subr.mxu0 0.0
        %1728 = vmatpush2.msra.mxu0 0.0
        %1729 = vmatprep.subr.mxu0 0.0
        %1730 = vmatpush2.msra.mxu0 0.0
        %1731 = vmatprep.subr.mxu0 0.0
        %1732 = vmatpush2.msra.mxu0 0.0
        %1733 = vmatprep.subr.mxu0 0.0
        %1734 = vmatpush2.msra.mxu0 0.0
        %1735 = vmatprep.subr.mxu0 0.0
        %1736 = vmatpush2.msra.mxu0 0.0
        %1737 = vmatprep.subr.mxu0 0.0
        %1738 = vmatpush2.msra.mxu0 0.0
        %1739 = vmatprep.subr.mxu0 0.0
        %1740 = vmatpush2.msra.mxu0 0.0
        %1741 = vmatprep.subr.mxu0 0.0
        %1742 = vmatpush2.msra.mxu0 0.0
        %1743 = vmatprep.subr.mxu0 0.0
        %1744 = vmatpush2.msra.mxu0 0.0
        %1745 = vmatprep.subr.mxu0 0.0
        %1746 = vmatpush2.msra.mxu0 0.0
        %1747 = vmatprep.subr.mxu0 0.0
        %1748 = vmatpush2.msra.mxu0 0.0
        %1749 = vmatprep.subr.mxu0 0.0
        %1750 = vmatpush2.msra.mxu0 0.0
        %1751 = vmatprep.subr.mxu0 0.0
        %1752 = vmatpush2.msra.mxu0 0.0
        %1753 = vmatprep.subr.mxu0 0.0
        %1754 = vmatpush2.msra.mxu0 0.0
        %v1755 = vand.u32 %v1274, 4294901760
        %v1756 = vsub.f32 %v1274, %v1755
        %1757 = vmatprep.mubr.f32.mxu0 %v1756
        %v1758 = vand.u32 %v1273, 4294901760
        %v1759 = vsub.f32 %v1273, %v1758
        %1760 = vmatmul.mubr.f32.gmra.mxu0 %v1759
        %v1761 = vpop.f32.mrf.mxu0
        %v1762 = vadd.f32 %v1611, %v1761
        %v1763 = vpop.f32.mrf.mxu0
        %v1764 = vand.u32 %v1276, 4294901760
        %v1765 = vsub.f32 %v1276, %v1764
        %1766 = vmatprep.mubr.f32.mxu0 %v1765
        %v1767 = vand.u32 %v1275, 4294901760
        %v1768 = vsub.f32 %v1275, %v1767
        %1769 = vmatmul.mubr.f32.gmra.mxu0 %v1768
        %v1770 = vpop.f32.mrf.mxu0
        %v1771 = vadd.f32 %v1618, %v1770
        %v1772 = vpop.f32.mrf.mxu0
        %v1773 = vand.u32 %v1278, 4294901760
        %v1774 = vsub.f32 %v1278, %v1773
        %1775 = vmatprep.mubr.f32.mxu0 %v1774
        %v1776 = vand.u32 %v1277, 4294901760
        %v1777 = vsub.f32 %v1277, %v1776
        %1778 = vmatmul.mubr.f32.gmra.mxu0 %v1777
        %v1779 = vpop.f32.mrf.mxu0
        %v1780 = vadd.f32 %v1625, %v1779
        %v1781 = vpop.f32.mrf.mxu0
        %v1782 = vand.u32 %v1280, 4294901760
        %v1783 = vsub.f32 %v1280, %v1782
        %1784 = vmatprep.mubr.f32.mxu0 %v1783
        %v1785 = vand.u32 %v1279, 4294901760
        %v1786 = vsub.f32 %v1279, %v1785
        %1787 = vmatmul.mubr.f32.gmra.mxu0 %v1786
        %v1788 = vpop.f32.mrf.mxu0
        %v1789 = vadd.f32 %v1632, %v1788
        %v1790 = vpop.f32.mrf.mxu0
        %v1791 = vand.u32 %v1282, 4294901760
        %v1792 = vsub.f32 %v1282, %v1791
        %1793 = vmatprep.mubr.f32.mxu0 %v1792
        %v1794 = vand.u32 %v1281, 4294901760
        %v1795 = vsub.f32 %v1281, %v1794
        %1796 = vmatmul.mubr.f32.gmra.mxu0 %v1795
        %v1797 = vpop.f32.mrf.mxu0
        %v1798 = vadd.f32 %v1639, %v1797
        %v1799 = vpop.f32.mrf.mxu0
        %v1800 = vand.u32 %v1284, 4294901760
        %v1801 = vsub.f32 %v1284, %v1800
        %1802 = vmatprep.mubr.f32.mxu0 %v1801
        %v1803 = vand.u32 %v1283, 4294901760
        %v1804 = vsub.f32 %v1283, %v1803
        %1805 = vmatmul.mubr.f32.gmra.mxu0 %v1804
        %v1806 = vpop.f32.mrf.mxu0
        %v1807 = vadd.f32 %v1646, %v1806
        %v1808 = vpop.f32.mrf.mxu0
        %v1809 = vand.u32 %v1286, 4294901760
        %v1810 = vsub.f32 %v1286, %v1809
        %1811 = vmatprep.mubr.f32.mxu0 %v1810
        %v1812 = vand.u32 %v1285, 4294901760
        %v1813 = vsub.f32 %v1285, %v1812
        %1814 = vmatmul.mubr.f32.gmra.mxu0 %v1813
        %v1815 = vpop.f32.mrf.mxu0
        %v1816 = vadd.f32 %v1653, %v1815
        %v1817 = vpop.f32.mrf.mxu0
        %v1818 = vand.u32 %v1288, 4294901760
        %v1819 = vsub.f32 %v1288, %v1818
        %1820 = vmatprep.mubr.f32.mxu0 %v1819
        %v1821 = vand.u32 %v1287, 4294901760
        %v1822 = vsub.f32 %v1287, %v1821
        %1823 = vmatmul.mubr.f32.gmra.mxu0 %v1822
        %v1824 = vpop.f32.mrf.mxu0
        %v1825 = vadd.f32 %v1660, %v1824
        %v1826 = vpop.f32.mrf.mxu0
        %v1827 = vand.u32 %v1290, 4294901760
        %v1828 = vsub.f32 %v1290, %v1827
        %1829 = vmatprep.mubr.f32.mxu0 %v1828
        %v1830 = vand.u32 %v1289, 4294901760
        %v1831 = vsub.f32 %v1289, %v1830
        %1832 = vmatmul.mubr.f32.gmra.mxu0 %v1831
        %v1833 = vpop.f32.mrf.mxu0
        %v1834 = vadd.f32 %v1667, %v1833
        %v1835 = vpop.f32.mrf.mxu0
        %v1836 = vand.u32 %v1292, 4294901760
        %v1837 = vsub.f32 %v1292, %v1836
        %1838 = vmatprep.mubr.f32.mxu0 %v1837
        %v1839 = vand.u32 %v1291, 4294901760
        %v1840 = vsub.f32 %v1291, %v1839
        %1841 = vmatmul.mubr.f32.gmra.mxu0 %v1840
        %v1842 = vpop.f32.mrf.mxu0
        %v1843 = vadd.f32 %v1674, %v1842
        %v1844 = vpop.f32.mrf.mxu0
        %v1845 = vand.u32 %v1294, 4294901760
        %v1846 = vsub.f32 %v1294, %v1845
        %1847 = vmatprep.mubr.f32.mxu0 %v1846
        %v1848 = vand.u32 %v1293, 4294901760
        %v1849 = vsub.f32 %v1293, %v1848
        %1850 = vmatmul.mubr.f32.gmra.mxu0 %v1849
        %v1851 = vpop.f32.mrf.mxu0
        %v1852 = vadd.f32 %v1681, %v1851
        %v1853 = vpop.f32.mrf.mxu0
        %v1854 = vand.u32 %v1296, 4294901760
        %v1855 = vsub.f32 %v1296, %v1854
        %1856 = vmatprep.mubr.f32.mxu0 %v1855
        %v1857 = vand.u32 %v1295, 4294901760
        %v1858 = vsub.f32 %v1295, %v1857
        %1859 = vmatmul.mubr.f32.gmra.mxu0 %v1858
        %v1860 = vpop.f32.mrf.mxu0
        %v1861 = vadd.f32 %v1688, %v1860
        %v1862 = vpop.f32.mrf.mxu0
        %1863 = vdwg.mxu0
        %1864 = vmatprep.subr.mxu0 0.0
        %1865 = vmatpush1.msra.mxu0 1.0
        %1866 = vmatprep.subr.mxu0 0.0
        %1867 = vmatpush1.msra.mxu0 1.0
        %1868 = vmatprep.subr.mxu0 0.0
        %1869 = vmatpush1.msra.mxu0 1.0
        %1870 = vmatprep.subr.mxu0 0.0
        %1871 = vmatpush1.msra.mxu0 1.0
        %1872 = vmatprep.subr.mxu0 0.0
        %1873 = vmatpush1.msra.mxu0 1.0
        %1874 = vmatprep.subr.mxu0 0.0
        %1875 = vmatpush1.msra.mxu0 1.0
        %1876 = vmatprep.subr.mxu0 0.0
        %1877 = vmatpush1.msra.mxu0 1.0
        %1878 = vmatprep.subr.mxu0 0.0
        %1879 = vmatpush1.msra.mxu0 1.0
        %1880 = vmatprep.subr.mxu0 0.0
        %1881 = vmatpush1.msra.mxu0 1.0
        %1882 = vmatprep.subr.mxu0 0.0
        %1883 = vmatpush1.msra.mxu0 1.0
        %1884 = vmatprep.subr.mxu0 0.0
        %1885 = vmatpush1.msra.mxu0 1.0
        %1886 = vmatprep.subr.mxu0 0.0
        %1887 = vmatpush1.msra.mxu0 1.0
        %1888 = vmatprep.subr.mxu0 0.0
        %1889 = vmatpush1.msra.mxu0 1.0
        %1890 = vmatprep.subr.mxu0 0.0
        %1891 = vmatpush1.msra.mxu0 1.0
        %1892 = vmatprep.subr.mxu0 0.0
        %1893 = vmatpush1.msra.mxu0 1.0
        %1894 = vmatprep.subr.mxu0 0.0
        %1895 = vmatpush1.msra.mxu0 1.0
        %1896 = vmatprep.subr.mxu0 0.0
        %1897 = vmatpush2.msra.mxu0 1.0
        %1898 = vmatprep.subr.mxu0 0.0
        %1899 = vmatpush2.msra.mxu0 1.0
        %1900 = vmatprep.subr.mxu0 0.0
        %1901 = vmatpush2.msra.mxu0 1.0
        %1902 = vmatprep.subr.mxu0 0.0
        %1903 = vmatpush2.msra.mxu0 1.0
        %1904 = vmatprep.subr.mxu0 0.0
        %1905 = vmatpush2.msra.mxu0 1.0
        %1906 = vmatprep.subr.mxu0 0.0
        %1907 = vmatpush2.msra.mxu0 1.0
        %1908 = vmatprep.subr.mxu0 0.0
        %1909 = vmatpush2.msra.mxu0 1.0
        %1910 = vmatprep.subr.mxu0 0.0
        %1911 = vmatpush2.msra.mxu0 1.0
        %1912 = vmatprep.subr.mxu0 0.0
        %1913 = vmatpush2.msra.mxu0 1.0
        %1914 = vmatprep.subr.mxu0 0.0
        %1915 = vmatpush2.msra.mxu0 1.0
        %1916 = vmatprep.subr.mxu0 0.0
        %1917 = vmatpush2.msra.mxu0 1.0
        %1918 = vmatprep.subr.mxu0 0.0
        %1919 = vmatpush2.msra.mxu0 1.0
        %1920 = vmatprep.subr.mxu0 0.0
        %1921 = vmatpush2.msra.mxu0 1.0
        %1922 = vmatprep.subr.mxu0 0.0
        %1923 = vmatpush2.msra.mxu0 1.0
        %1924 = vmatprep.subr.mxu0 0.0
        %1925 = vmatpush2.msra.mxu0 1.0
        %1926 = vmatprep.subr.mxu0 0.0
        %1927 = vmatpush2.msra.mxu0 1.0
        %v1928 = vand.u32 %v1274, 4294901760
        %v1929 = vsub.f32 %v1274, %v1928
        %v1930 = vand.u32 %v1929, 4294901760
        %1931 = vmatprep.mubr.f32.mxu0 %v1930
        %v1932 = vand.u32 %v1273, 4294901760
        %v1933 = vsub.f32 %v1273, %v1932
        %v1934 = vand.u32 %v1933, 4294901760
        %1935 = vmatmul.mubr.f32.gmra.mxu0 %v1934
        %v1936 = vpop.f32.mrf.mxu0
        %v1937 = vadd.f32 %v1762, %v1936
        %v1938 = vpop.f32.mrf.mxu0
        %v1939 = vand.u32 %v1276, 4294901760
        %v1940 = vsub.f32 %v1276, %v1939
        %v1941 = vand.u32 %v1940, 4294901760
        %1942 = vmatprep.mubr.f32.mxu0 %v1941
        %v1943 = vand.u32 %v1275, 4294901760
        %v1944 = vsub.f32 %v1275, %v1943
        %v1945 = vand.u32 %v1944, 4294901760
        %1946 = vmatmul.mubr.f32.gmra.mxu0 %v1945
        %v1947 = vpop.f32.mrf.mxu0
        %v1948 = vadd.f32 %v1771, %v1947
        %v1949 = vpop.f32.mrf.mxu0
        %v1950 = vand.u32 %v1278, 4294901760
        %v1951 = vsub.f32 %v1278, %v1950
        %v1952 = vand.u32 %v1951, 4294901760
        %1953 = vmatprep.mubr.f32.mxu0 %v1952
        %v1954 = vand.u32 %v1277, 4294901760
        %v1955 = vsub.f32 %v1277, %v1954
        %v1956 = vand.u32 %v1955, 4294901760
        %1957 = vmatmul.mubr.f32.gmra.mxu0 %v1956
        %v1958 = vpop.f32.mrf.mxu0
        %v1959 = vadd.f32 %v1780, %v1958
        %v1960 = vpop.f32.mrf.mxu0
        %v1961 = vand.u32 %v1280, 4294901760
        %v1962 = vsub.f32 %v1280, %v1961
        %v1963 = vand.u32 %v1962, 4294901760
        %1964 = vmatprep.mubr.f32.mxu0 %v1963
        %v1965 = vand.u32 %v1279, 4294901760
        %v1966 = vsub.f32 %v1279, %v1965
        %v1967 = vand.u32 %v1966, 4294901760
        %1968 = vmatmul.mubr.f32.gmra.mxu0 %v1967
        %v1969 = vpop.f32.mrf.mxu0
        %v1970 = vadd.f32 %v1789, %v1969
        %v1971 = vpop.f32.mrf.mxu0
        %v1972 = vand.u32 %v1282, 4294901760
        %v1973 = vsub.f32 %v1282, %v1972
        %v1974 = vand.u32 %v1973, 4294901760
        %1975 = vmatprep.mubr.f32.mxu0 %v1974
        %v1976 = vand.u32 %v1281, 4294901760
        %v1977 = vsub.f32 %v1281, %v1976
        %v1978 = vand.u32 %v1977, 4294901760
        %1979 = vmatmul.mubr.f32.gmra.mxu0 %v1978
        %v1980 = vpop.f32.mrf.mxu0
        %v1981 = vadd.f32 %v1798, %v1980
        %v1982 = vpop.f32.mrf.mxu0
        %v1983 = vand.u32 %v1284, 4294901760
        %v1984 = vsub.f32 %v1284, %v1983
        %v1985 = vand.u32 %v1984, 4294901760
        %1986 = vmatprep.mubr.f32.mxu0 %v1985
        %v1987 = vand.u32 %v1283, 4294901760
        %v1988 = vsub.f32 %v1283, %v1987
        %v1989 = vand.u32 %v1988, 4294901760
        %1990 = vmatmul.mubr.f32.gmra.mxu0 %v1989
        %v1991 = vpop.f32.mrf.mxu0
        %v1992 = vadd.f32 %v1807, %v1991
        %v1993 = vpop.f32.mrf.mxu0
        %v1994 = vand.u32 %v1286, 4294901760
        %v1995 = vsub.f32 %v1286, %v1994
        %v1996 = vand.u32 %v1995, 4294901760
        %1997 = vmatprep.mubr.f32.mxu0 %v1996
        %v1998 = vand.u32 %v1285, 4294901760
        %v1999 = vsub.f32 %v1285, %v1998
        %v2000 = vand.u32 %v1999, 4294901760
        %2001 = vmatmul.mubr.f32.gmra.mxu0 %v2000
        %v2002 = vpop.f32.mrf.mxu0
        %v2003 = vadd.f32 %v1816, %v2002
        %v2004 = vpop.f32.mrf.mxu0
        %v2005 = vand.u32 %v1288, 4294901760
        %v2006 = vsub.f32 %v1288, %v2005
        %v2007 = vand.u32 %v2006, 4294901760
        %2008 = vmatprep.mubr.f32.mxu0 %v2007
        %v2009 = vand.u32 %v1287, 4294901760
        %v2010 = vsub.f32 %v1287, %v2009
        %v2011 = vand.u32 %v2010, 4294901760
        %2012 = vmatmul.mubr.f32.gmra.mxu0 %v2011
        %v2013 = vpop.f32.mrf.mxu0
        %v2014 = vadd.f32 %v1825, %v2013
        %v2015 = vpop.f32.mrf.mxu0
        %v2016 = vand.u32 %v1290, 4294901760
        %v2017 = vsub.f32 %v1290, %v2016
        %v2018 = vand.u32 %v2017, 4294901760
        %2019 = vmatprep.mubr.f32.mxu0 %v2018
        %v2020 = vand.u32 %v1289, 4294901760
        %v2021 = vsub.f32 %v1289, %v2020
        %v2022 = vand.u32 %v2021, 4294901760
        %2023 = vmatmul.mubr.f32.gmra.mxu0 %v2022
        %v2024 = vpop.f32.mrf.mxu0
        %v2025 = vadd.f32 %v1834, %v2024
        %v2026 = vpop.f32.mrf.mxu0
        %v2027 = vand.u32 %v1292, 4294901760
        %v2028 = vsub.f32 %v1292, %v2027
        %v2029 = vand.u32 %v2028, 4294901760
        %2030 = vmatprep.mubr.f32.mxu0 %v2029
        %v2031 = vand.u32 %v1291, 4294901760
        %v2032 = vsub.f32 %v1291, %v2031
        %v2033 = vand.u32 %v2032, 4294901760
        %2034 = vmatmul.mubr.f32.gmra.mxu0 %v2033
        %v2035 = vpop.f32.mrf.mxu0
        %v2036 = vadd.f32 %v1843, %v2035
        %v2037 = vpop.f32.mrf.mxu0
        %v2038 = vand.u32 %v1294, 4294901760
        %v2039 = vsub.f32 %v1294, %v2038
        %v2040 = vand.u32 %v2039, 4294901760
        %2041 = vmatprep.mubr.f32.mxu0 %v2040
        %v2042 = vand.u32 %v1293, 4294901760
        %v2043 = vsub.f32 %v1293, %v2042
        %v2044 = vand.u32 %v2043, 4294901760
        %2045 = vmatmul.mubr.f32.gmra.mxu0 %v2044
        %v2046 = vpop.f32.mrf.mxu0
        %v2047 = vadd.f32 %v1852, %v2046
        %v2048 = vpop.f32.mrf.mxu0
        %v2049 = vand.u32 %v1296, 4294901760
        %v2050 = vsub.f32 %v1296, %v2049
        %v2051 = vand.u32 %v2050, 4294901760
        %2052 = vmatprep.mubr.f32.mxu0 %v2051
        %v2053 = vand.u32 %v1295, 4294901760
        %v2054 = vsub.f32 %v1295, %v2053
        %v2055 = vand.u32 %v2054, 4294901760
        %2056 = vmatmul.mubr.f32.gmra.mxu0 %v2055
        %v2057 = vpop.f32.mrf.mxu0
        %v2058 = vadd.f32 %v1861, %v2057
        %v2059 = vpop.f32.mrf.mxu0
        %2060 = vdwg.mxu0
        %2061 = vmatprep.subr.mxu0 0.0
        %2062 = vmatpush1.msra.mxu0 0.0
        %2063 = vmatprep.subr.mxu0 0.0
        %2064 = vmatpush1.msra.mxu0 0.0
        %2065 = vmatprep.subr.mxu0 0.0
        %2066 = vmatpush1.msra.mxu0 0.0
        %2067 = vmatprep.subr.mxu0 0.0
        %2068 = vmatpush1.msra.mxu0 0.0
        %2069 = vmatprep.subr.mxu0 0.0
        %2070 = vmatpush1.msra.mxu0 0.0
        %2071 = vmatprep.subr.mxu0 0.0
        %2072 = vmatpush1.msra.mxu0 0.0
        %2073 = vmatprep.subr.mxu0 0.0
        %2074 = vmatpush1.msra.mxu0 0.0
        %2075 = vmatprep.subr.mxu0 0.0
        %2076 = vmatpush1.msra.mxu0 0.0
        %2077 = vmatprep.subr.mxu0 0.0
        %2078 = vmatpush1.msra.mxu0 0.0
        %2079 = vmatprep.subr.mxu0 0.0
        %2080 = vmatpush1.msra.mxu0 0.0
        %2081 = vmatprep.subr.mxu0 0.0
        %2082 = vmatpush1.msra.mxu0 0.0
        %2083 = vmatprep.subr.mxu0 0.0
        %2084 = vmatpush1.msra.mxu0 0.0
        %2085 = vmatprep.subr.mxu0 0.0
        %2086 = vmatpush1.msra.mxu0 0.0
        %2087 = vmatprep.subr.mxu0 0.0
        %2088 = vmatpush1.msra.mxu0 0.0
        %2089 = vmatprep.subr.mxu0 0.0
        %2090 = vmatpush1.msra.mxu0 0.0
        %2091 = vmatprep.subr.mxu0 0.0
        %2092 = vmatpush1.msra.mxu0 0.0
        %2093 = vmatprep.subr.mxu0 0.0
        %2094 = vmatpush2.msra.mxu0 0.0
        %2095 = vmatprep.subr.mxu0 0.0
        %2096 = vmatpush2.msra.mxu0 0.0
        %2097 = vmatprep.subr.mxu0 0.0
        %2098 = vmatpush2.msra.mxu0 0.0
        %2099 = vmatprep.subr.mxu0 0.0
        %2100 = vmatpush2.msra.mxu0 0.0
        %2101 = vmatprep.subr.mxu0 0.0
        %2102 = vmatpush2.msra.mxu0 0.0
        %2103 = vmatprep.subr.mxu0 0.0
        %2104 = vmatpush2.msra.mxu0 0.0
        %2105 = vmatprep.subr.mxu0 0.0
        %2106 = vmatpush2.msra.mxu0 0.0
        %2107 = vmatprep.subr.mxu0 0.0
        %2108 = vmatpush2.msra.mxu0 0.0
        %2109 = vmatprep.subr.mxu0 0.0
        %2110 = vmatpush2.msra.mxu0 0.0
        %2111 = vmatprep.subr.mxu0 0.0
        %2112 = vmatpush2.msra.mxu0 0.0
        %2113 = vmatprep.subr.mxu0 0.0
        %2114 = vmatpush2.msra.mxu0 0.0
        %2115 = vmatprep.subr.mxu0 0.0
        %2116 = vmatpush2.msra.mxu0 0.0
        %2117 = vmatprep.subr.mxu0 0.0
        %2118 = vmatpush2.msra.mxu0 0.0
        %2119 = vmatprep.subr.mxu0 0.0
        %2120 = vmatpush2.msra.mxu0 0.0
        %2121 = vmatprep.subr.mxu0 0.0
        %2122 = vmatpush2.msra.mxu0 0.0
        %2123 = vmatprep.subr.mxu0 0.0
        %2124 = vmatpush2.msra.mxu0 0.0
        %v2125 = vand.u32 %v1274, 4294901760
        %2126 = vmatprep.mubr.f32.mxu0 %v2125
        %v2127 = vand.u32 %v1273, 4294901760
        %2128 = vmatmul.mubr.f32.gmra.mxu0 %v2127
        %v2129 = vpop.f32.mrf.mxu0
        %v2130 = vadd.f32 %v1937, %v2129
        %v2131 = vpop.f32.mrf.mxu0
        %v2132 = vand.u32 %v1276, 4294901760
        %2133 = vmatprep.mubr.f32.mxu0 %v2132
        %v2134 = vand.u32 %v1275, 4294901760
        %2135 = vmatmul.mubr.f32.gmra.mxu0 %v2134
        %v2136 = vpop.f32.mrf.mxu0
        %v2137 = vadd.f32 %v1948, %v2136
        %v2138 = vpop.f32.mrf.mxu0
        %v2139 = vand.u32 %v1278, 4294901760
        %2140 = vmatprep.mubr.f32.mxu0 %v2139
        %v2141 = vand.u32 %v1277, 4294901760
        %2142 = vmatmul.mubr.f32.gmra.mxu0 %v2141
        %v2143 = vpop.f32.mrf.mxu0
        %v2144 = vadd.f32 %v1959, %v2143
        %v2145 = vpop.f32.mrf.mxu0
        %v2146 = vand.u32 %v1280, 4294901760
        %2147 = vmatprep.mubr.f32.mxu0 %v2146
        %v2148 = vand.u32 %v1279, 4294901760
        %2149 = vmatmul.mubr.f32.gmra.mxu0 %v2148
        %v2150 = vpop.f32.mrf.mxu0
        %v2151 = vadd.f32 %v1970, %v2150
        %v2152 = vpop.f32.mrf.mxu0
        %v2153 = vand.u32 %v1282, 4294901760
        %2154 = vmatprep.mubr.f32.mxu0 %v2153
        %v2155 = vand.u32 %v1281, 4294901760
        %2156 = vmatmul.mubr.f32.gmra.mxu0 %v2155
        %v2157 = vpop.f32.mrf.mxu0
        %v2158 = vadd.f32 %v1981, %v2157
        %v2159 = vpop.f32.mrf.mxu0
        %v2160 = vand.u32 %v1284, 4294901760
        %2161 = vmatprep.mubr.f32.mxu0 %v2160
        %v2162 = vand.u32 %v1283, 4294901760
        %2163 = vmatmul.mubr.f32.gmra.mxu0 %v2162
        %v2164 = vpop.f32.mrf.mxu0
        %v2165 = vadd.f32 %v1992, %v2164
        %v2166 = vpop.f32.mrf.mxu0
        %v2167 = vand.u32 %v1286, 4294901760
        %2168 = vmatprep.mubr.f32.mxu0 %v2167
        %v2169 = vand.u32 %v1285, 4294901760
        %2170 = vmatmul.mubr.f32.gmra.mxu0 %v2169
        %v2171 = vpop.f32.mrf.mxu0
        %v2172 = vadd.f32 %v2003, %v2171
        %v2173 = vpop.f32.mrf.mxu0
        %v2174 = vand.u32 %v1288, 4294901760
        %2175 = vmatprep.mubr.f32.mxu0 %v2174
        %v2176 = vand.u32 %v1287, 4294901760
        %2177 = vmatmul.mubr.f32.gmra.mxu0 %v2176
        %v2178 = vpop.f32.mrf.mxu0
        %v2179 = vadd.f32 %v2014, %v2178
        %v2180 = vpop.f32.mrf.mxu0
        %v2181 = vand.u32 %v1290, 4294901760
        %2182 = vmatprep.mubr.f32.mxu0 %v2181
        %v2183 = vand.u32 %v1289, 4294901760
        %2184 = vmatmul.mubr.f32.gmra.mxu0 %v2183
        %v2185 = vpop.f32.mrf.mxu0
        %v2186 = vadd.f32 %v2025, %v2185
        %v2187 = vpop.f32.mrf.mxu0
        %v2188 = vand.u32 %v1292, 4294901760
        %2189 = vmatprep.mubr.f32.mxu0 %v2188
        %v2190 = vand.u32 %v1291, 4294901760
        %2191 = vmatmul.mubr.f32.gmra.mxu0 %v2190
        %v2192 = vpop.f32.mrf.mxu0
        %v2193 = vadd.f32 %v2036, %v2192
        %v2194 = vpop.f32.mrf.mxu0
        %v2195 = vand.u32 %v1294, 4294901760
        %2196 = vmatprep.mubr.f32.mxu0 %v2195
        %v2197 = vand.u32 %v1293, 4294901760
        %2198 = vmatmul.mubr.f32.gmra.mxu0 %v2197
        %v2199 = vpop.f32.mrf.mxu0
        %v2200 = vadd.f32 %v2047, %v2199
        %v2201 = vpop.f32.mrf.mxu0
        %v2202 = vand.u32 %v1296, 4294901760
        %2203 = vmatprep.mubr.f32.mxu0 %v2202
        %v2204 = vand.u32 %v1295, 4294901760
        %2205 = vmatmul.mubr.f32.gmra.mxu0 %v2204
        %v2206 = vpop.f32.mrf.mxu0
        %v2207 = vadd.f32 %v2058, %v2206
        %v2208 = vpop.f32.mrf.mxu0
        %2209 = vdwg.mxu0
        %2210 = vmatprep.subr.mxu0 0.0
        %2211 = vmatpush1.msra.mxu0 1.0
        %2212 = vmatprep.subr.mxu0 0.0
        %2213 = vmatpush1.msra.mxu0 1.0
        %2214 = vmatprep.subr.mxu0 0.0
        %2215 = vmatpush1.msra.mxu0 1.0
        %2216 = vmatprep.subr.mxu0 0.0
        %2217 = vmatpush1.msra.mxu0 1.0
        %2218 = vmatprep.subr.mxu0 0.0
        %2219 = vmatpush1.msra.mxu0 1.0
        %2220 = vmatprep.subr.mxu0 0.0
        %2221 = vmatpush1.msra.mxu0 1.0
        %2222 = vmatprep.subr.mxu0 0.0
        %2223 = vmatpush1.msra.mxu0 1.0
        %2224 = vmatprep.subr.mxu0 0.0
        %2225 = vmatpush1.msra.mxu0 1.0
        %2226 = vmatprep.subr.mxu0 0.0
        %2227 = vmatpush1.msra.mxu0 1.0
        %2228 = vmatprep.subr.mxu0 0.0
        %2229 = vmatpush1.msra.mxu0 1.0
        %2230 = vmatprep.subr.mxu0 0.0
        %2231 = vmatpush1.msra.mxu0 1.0
        %2232 = vmatprep.subr.mxu0 0.0
        %2233 = vmatpush1.msra.mxu0 1.0
        %2234 = vmatprep.subr.mxu0 0.0
        %2235 = vmatpush1.msra.mxu0 1.0
        %2236 = vmatprep.subr.mxu0 0.0
        %2237 = vmatpush1.msra.mxu0 1.0
        %2238 = vmatprep.subr.mxu0 0.0
        %2239 = vmatpush1.msra.mxu0 1.0
        %2240 = vmatprep.subr.mxu0 0.0
        %2241 = vmatpush1.msra.mxu0 1.0
        %2242 = vmatprep.subr.mxu0 0.0
        %2243 = vmatpush2.msra.mxu0 1.0
        %2244 = vmatprep.subr.mxu0 0.0
        %2245 = vmatpush2.msra.mxu0 1.0
        %2246 = vmatprep.subr.mxu0 0.0
        %2247 = vmatpush2.msra.mxu0 1.0
        %2248 = vmatprep.subr.mxu0 0.0
        %2249 = vmatpush2.msra.mxu0 1.0
        %2250 = vmatprep.subr.mxu0 0.0
        %2251 = vmatpush2.msra.mxu0 1.0
        %2252 = vmatprep.subr.mxu0 0.0
        %2253 = vmatpush2.msra.mxu0 1.0
        %2254 = vmatprep.subr.mxu0 0.0
        %2255 = vmatpush2.msra.mxu0 1.0
        %2256 = vmatprep.subr.mxu0 0.0
        %2257 = vmatpush2.msra.mxu0 1.0
        %2258 = vmatprep.subr.mxu0 0.0
        %2259 = vmatpush2.msra.mxu0 1.0
        %2260 = vmatprep.subr.mxu0 0.0
        %2261 = vmatpush2.msra.mxu0 1.0
        %2262 = vmatprep.subr.mxu0 0.0
        %2263 = vmatpush2.msra.mxu0 1.0
        %2264 = vmatprep.subr.mxu0 0.0
        %2265 = vmatpush2.msra.mxu0 1.0
        %2266 = vmatprep.subr.mxu0 0.0
        %2267 = vmatpush2.msra.mxu0 1.0
        %2268 = vmatprep.subr.mxu0 0.0
        %2269 = vmatpush2.msra.mxu0 1.0
        %2270 = vmatprep.subr.mxu0 0.0
        %2271 = vmatpush2.msra.mxu0 1.0
        %2272 = vmatprep.subr.mxu0 0.0
        %2273 = vmatpush2.msra.mxu0 1.0
        %v2274 = vand.u32 %v1274, 4294901760
        %2275 = vmatprep.mubr.f32.mxu0 %v2274
        %v2276 = vand.u32 %v1273, 4294901760
        %2277 = vmatmul.mubr.f32.gmra.mxu0 %v2276
        %v2278 = vpop.f32.mrf.mxu0
        %v2279 = vadd.f32 %v2130, %v2278
        %v2280 = vpop.f32.mrf.mxu0
        %v2281 = vand.u32 %v1276, 4294901760
        %2282 = vmatprep.mubr.f32.mxu0 %v2281
        %v2283 = vand.u32 %v1275, 4294901760
        %2284 = vmatmul.mubr.f32.gmra.mxu0 %v2283
        %v2285 = vpop.f32.mrf.mxu0
        %v2286 = vadd.f32 %v2137, %v2285
        %v2287 = vpop.f32.mrf.mxu0
        %v2288 = vand.u32 %v1278, 4294901760
        %2289 = vmatprep.mubr.f32.mxu0 %v2288
        %v2290 = vand.u32 %v1277, 4294901760
        %2291 = vmatmul.mubr.f32.gmra.mxu0 %v2290
        %v2292 = vpop.f32.mrf.mxu0
        %v2293 = vadd.f32 %v2144, %v2292
        %v2294 = vpop.f32.mrf.mxu0
        %v2295 = vand.u32 %v1280, 4294901760
        %2296 = vmatprep.mubr.f32.mxu0 %v2295
        %v2297 = vand.u32 %v1279, 4294901760
        %2298 = vmatmul.mubr.f32.gmra.mxu0 %v2297
        %v2299 = vpop.f32.mrf.mxu0
        %v2300 = vadd.f32 %v2151, %v2299
        %v2301 = vpop.f32.mrf.mxu0
        %v2302 = vand.u32 %v1282, 4294901760
        %2303 = vmatprep.mubr.f32.mxu0 %v2302
        %v2304 = vand.u32 %v1281, 4294901760
        %2305 = vmatmul.mubr.f32.gmra.mxu0 %v2304
        %v2306 = vpop.f32.mrf.mxu0
        %v2307 = vadd.f32 %v2158, %v2306
        %v2308 = vpop.f32.mrf.mxu0
        %v2309 = vand.u32 %v1284, 4294901760
        %2310 = vmatprep.mubr.f32.mxu0 %v2309
        %v2311 = vand.u32 %v1283, 4294901760
        %2312 = vmatmul.mubr.f32.gmra.mxu0 %v2311
        %v2313 = vpop.f32.mrf.mxu0
        %v2314 = vadd.f32 %v2165, %v2313
        %v2315 = vpop.f32.mrf.mxu0
        %v2316 = vand.u32 %v1286, 4294901760
        %2317 = vmatprep.mubr.f32.mxu0 %v2316
        %v2318 = vand.u32 %v1285, 4294901760
        %2319 = vmatmul.mubr.f32.gmra.mxu0 %v2318
        %v2320 = vpop.f32.mrf.mxu0
        %v2321 = vadd.f32 %v2172, %v2320
        %v2322 = vpop.f32.mrf.mxu0
        %v2323 = vand.u32 %v1288, 4294901760
        %2324 = vmatprep.mubr.f32.mxu0 %v2323
        %v2325 = vand.u32 %v1287, 4294901760
        %2326 = vmatmul.mubr.f32.gmra.mxu0 %v2325
        %v2327 = vpop.f32.mrf.mxu0
        %v2328 = vadd.f32 %v2179, %v2327
        %v2329 = vpop.f32.mrf.mxu0
        %v2330 = vand.u32 %v1290, 4294901760
        %2331 = vmatprep.mubr.f32.mxu0 %v2330
        %v2332 = vand.u32 %v1289, 4294901760
        %2333 = vmatmul.mubr.f32.gmra.mxu0 %v2332
        %v2334 = vpop.f32.mrf.mxu0
        %v2335 = vadd.f32 %v2186, %v2334
        %v2336 = vpop.f32.mrf.mxu0
        %v2337 = vand.u32 %v1292, 4294901760
        %2338 = vmatprep.mubr.f32.mxu0 %v2337
        %v2339 = vand.u32 %v1291, 4294901760
        %2340 = vmatmul.mubr.f32.gmra.mxu0 %v2339
        %v2341 = vpop.f32.mrf.mxu0
        %v2342 = vadd.f32 %v2193, %v2341
        %v2343 = vpop.f32.mrf.mxu0
        %v2344 = vand.u32 %v1294, 4294901760
        %2345 = vmatprep.mubr.f32.mxu0 %v2344
        %v2346 = vand.u32 %v1293, 4294901760
        %2347 = vmatmul.mubr.f32.gmra.mxu0 %v2346
        %v2348 = vpop.f32.mrf.mxu0
        %v2349 = vadd.f32 %v2200, %v2348
        %v2350 = vpop.f32.mrf.mxu0
        %v2351 = vand.u32 %v1296, 4294901760
        %2352 = vmatprep.mubr.f32.mxu0 %v2351
        %v2353 = vand.u32 %v1295, 4294901760
        %2354 = vmatmul.mubr.f32.gmra.mxu0 %v2353
        %v2355 = vpop.f32.mrf.mxu0
        %v2356 = vadd.f32 %v2207, %v2355
        %v2357 = vpop.f32.mrf.mxu0
        %2358 = vdwg.mxu0
        %v2359 = vmul.f32 %v1193, 0.0069444445
        %v2360 = vmul.f32 %v1200, 0.0069444445
        %v2361 = vmul.f32 %v1207, 0.0069444445
        %v2362 = vmul.f32 %v1214, 0.0069444445
        %v2363 = vmul.f32 %v1221, 0.0069444445
        %v2364 = vmul.f32 %v1228, 0.0069444445
        %v2365 = vmul.f32 %v1235, 0.0069444445
        %v2366 = vmul.f32 %v1242, 0.0069444445
        %v2367 = vmul.f32 %v1249, 0.0069444445
        %v2368 = vmul.f32 %v1256, 0.0069444445
        %v2369 = vmul.f32 %v1263, 0.0069444445
        %v2370 = vmul.f32 %v1270, 0.0069444445
        %v2371 = vmul.f32 %v2279, 0.0069444445
        %v2372 = vmul.f32 %v2286, 0.0069444445
        %v2373 = vmul.f32 %v2293, 0.0069444445
        %v2374 = vmul.f32 %v2300, 0.0069444445
        %v2375 = vmul.f32 %v2307, 0.0069444445
        %v2376 = vmul.f32 %v2314, 0.0069444445
        %v2377 = vmul.f32 %v2321, 0.0069444445
        %v2378 = vmul.f32 %v2328, 0.0069444445
        %v2379 = vmul.f32 %v2335, 0.0069444445
        %v2380 = vmul.f32 %v2342, 0.0069444445
        %v2381 = vmul.f32 %v2349, 0.0069444445
        %v2382 = vmul.f32 %v2356, 0.0069444445
        %v2383 = vmul.f32 %v2359, %v2359
        %v2384 = vmul.f32 %v2360, %v2360
        %v2385 = vmul.f32 %v2361, %v2361
        %v2386 = vmul.f32 %v2362, %v2362
        %v2387 = vmul.f32 %v2363, %v2363
        %v2388 = vmul.f32 %v2364, %v2364
        %v2389 = vmul.f32 %v2365, %v2365
        %v2390 = vmul.f32 %v2366, %v2366
        %v2391 = vmul.f32 %v2367, %v2367
        %v2392 = vmul.f32 %v2368, %v2368
        %v2393 = vmul.f32 %v2369, %v2369
        %v2394 = vmul.f32 %v2370, %v2370
        %v2395 = vsub.f32 %v2371, %v2383
        %v2396 = vsub.f32 %v2372, %v2384
        %v2397 = vsub.f32 %v2373, %v2385
        %v2398 = vsub.f32 %v2374, %v2386
        %v2399 = vsub.f32 %v2375, %v2387
        %v2400 = vsub.f32 %v2376, %v2388
        %v2401 = vsub.f32 %v2377, %v2389
        %v2402 = vsub.f32 %v2378, %v2390
        %v2403 = vsub.f32 %v2379, %v2391
        %v2404 = vsub.f32 %v2380, %v2392
        %v2405 = vsub.f32 %v2381, %v2393
        %v2406 = vsub.f32 %v2382, %v2394
        %v2407 = vadd.f32 %v2395, 0.001
        %v2408 = vadd.f32 %v2396, 0.001
        %v2409 = vadd.f32 %v2397, 0.001
        %v2410 = vadd.f32 %v2398, 0.001
        %v2411 = vadd.f32 %v2399, 0.001
        %v2412 = vadd.f32 %v2400, 0.001
        %v2413 = vadd.f32 %v2401, 0.001
        %v2414 = vadd.f32 %v2402, 0.001
        %v2415 = vadd.f32 %v2403, 0.001
        %v2416 = vadd.f32 %v2404, 0.001
        %v2417 = vadd.f32 %v2405, 0.001
        %v2418 = vadd.f32 %v2406, 0.001
        %v2419 = vrsqrt.pop %v2407
        %v2420 = vrsqrt.pop %v2408
        %v2421 = vrsqrt.pop %v2409
        %v2422 = vrsqrt.pop %v2410
        %v2423 = vrsqrt.pop %v2411
        %v2424 = vrsqrt.pop %v2412
        %v2425 = vrsqrt.pop %v2413
        %v2426 = vrsqrt.pop %v2414
        %v2427 = vrsqrt.pop %v2415
        %v2428 = vrsqrt.pop %v2416
        %v2429 = vrsqrt.pop %v2417
        %v2430 = vrsqrt.pop %v2418
        %v2431 = vld [vmem:[%s184] sm:$0xff]
        %v2432 = vld [vmem:[%s184 + $0x8] sm:$0xff]
        %v2433 = vld [vmem:[%s184 + $0x10] sm:$0xff]
        %v2434 = vld [vmem:[%s184 + $0x18] sm:$0xff]
        %v2435 = vld [vmem:[%s184 + $0x20] sm:$0xff]
        %v2436 = vld [vmem:[%s184 + $0x28] sm:$0xff]
        %v2437 = vld [vmem:[%s184 + $0x30] sm:$0xff]
        %v2438 = vld [vmem:[%s184 + $0x38] sm:$0xff]
        %v2439 = vld [vmem:[%s184 + $0x40] sm:$0xff]
        %v2440 = vld [vmem:[%s184 + $0x48] sm:$0xff]
        %v2441 = vld [vmem:[%s184 + $0x50] sm:$0xff]
        %v2442 = vld [vmem:[%s184 + $0x58] sm:$0xff]
        %v2443 = vmul.f32 %v2431, %v2419
        %v2444 = vmul.f32 %v2432, %v2420
        %v2445 = vmul.f32 %v2433, %v2421
        %v2446 = vmul.f32 %v2434, %v2422
        %v2447 = vmul.f32 %v2435, %v2423
        %v2448 = vmul.f32 %v2436, %v2424
        %v2449 = vmul.f32 %v2437, %v2425
        %v2450 = vmul.f32 %v2438, %v2426
        %v2451 = vmul.f32 %v2439, %v2427
        %v2452 = vmul.f32 %v2440, %v2428
        %v2453 = vmul.f32 %v2441, %v2429
        %v2454 = vmul.f32 %v2442, %v2430
        %v2455 = vmul.f32 %v2359, %v2443
        %v2456 = vmul.f32 %v2360, %v2444
        %v2457 = vmul.f32 %v2361, %v2445
        %v2458 = vmul.f32 %v2362, %v2446
        %v2459 = vmul.f32 %v2363, %v2447
        %v2460 = vmul.f32 %v2364, %v2448
        %v2461 = vmul.f32 %v2365, %v2449
        %v2462 = vmul.f32 %v2366, %v2450
        %v2463 = vmul.f32 %v2367, %v2451
        %v2464 = vmul.f32 %v2368, %v2452
        %v2465 = vmul.f32 %v2369, %v2453
        %v2466 = vmul.f32 %v2370, %v2454
        %2479 = vrot.lane.b32.xlu0 %v2455, 1
        %v2480 = vpop.permute.xlu0 %2479
        %2481 = vrot.lane.b32.xlu0 %v2456, 1
        %v2482 = vpop.permute.xlu0 %2481
        %2483 = vrot.lane.b32.xlu0 %v2457, 1
        %v2484 = vpop.permute.xlu0 %2483
        %2485 = vrot.lane.b32.xlu0 %v2458, 1
        %v2486 = vpop.permute.xlu0 %2485
        %2487 = vrot.lane.b32.xlu0 %v2459, 1
        %v2488 = vpop.permute.xlu0 %2487
        %2489 = vrot.lane.b32.xlu0 %v2460, 1
        %v2490 = vpop.permute.xlu0 %2489
        %2491 = vrot.lane.b32.xlu0 %v2461, 1
        %v2492 = vpop.permute.xlu0 %2491
        %2493 = vrot.lane.b32.xlu0 %v2462, 1
        %v2494 = vpop.permute.xlu0 %2493
        %2495 = vrot.lane.b32.xlu0 %v2463, 1
        %v2496 = vpop.permute.xlu0 %2495
        %2497 = vrot.lane.b32.xlu0 %v2464, 1
        %v2498 = vpop.permute.xlu0 %2497
        %2499 = vrot.lane.b32.xlu0 %v2465, 1
        %v2500 = vpop.permute.xlu0 %2499
        %2501 = vrot.lane.b32.xlu0 %v2466, 1
        %v2502 = vpop.permute.xlu0 %2501
        %v2515 = vsub.f32 %v2431, %v2480
        %v2516 = vsub.f32 %v2432, %v2482
        %v2517 = vsub.f32 %v2433, %v2484
        %v2518 = vsub.f32 %v2434, %v2486
        %v2519 = vsub.f32 %v2435, %v2488
        %v2520 = vsub.f32 %v2436, %v2490
        %v2521 = vsub.f32 %v2437, %v2492
        %v2522 = vsub.f32 %v2438, %v2494
        %v2523 = vsub.f32 %v2439, %v2496
        %v2524 = vsub.f32 %v2440, %v2498
        %v2525 = vsub.f32 %v2441, %v2500
        %v2526 = vsub.f32 %v2442, %v2502
        %2528 = vset.pattern.permute.xlu0 0
        %2529 = vperm.xlu0 %2528, %v2443
        %v2530 = vpop.permute.xlu0 %2529
        %2533 = vset.pattern.permute.xlu0 0
        %2534 = vperm.xlu0 %2533, %v2444
        %v2535 = vpop.permute.xlu0 %2534
        %2538 = vset.pattern.permute.xlu0 0
        %2539 = vperm.xlu0 %2538, %v2445
        %v2540 = vpop.permute.xlu0 %2539
        %2543 = vset.pattern.permute.xlu0 0
        %2544 = vperm.xlu0 %2543, %v2446
        %v2545 = vpop.permute.xlu0 %2544
        %2548 = vset.pattern.permute.xlu0 0
        %2549 = vperm.xlu0 %2548, %v2447
        %v2550 = vpop.permute.xlu0 %2549
        %2553 = vset.pattern.permute.xlu0 0
        %2554 = vperm.xlu0 %2553, %v2448
        %v2555 = vpop.permute.xlu0 %2554
        %2558 = vset.pattern.permute.xlu0 0
        %2559 = vperm.xlu0 %2558, %v2449
        %v2560 = vpop.permute.xlu0 %2559
        %2563 = vset.pattern.permute.xlu0 0
        %2564 = vperm.xlu0 %2563, %v2450
        %v2565 = vpop.permute.xlu0 %2564
        %2568 = vset.pattern.permute.xlu0 0
        %2569 = vperm.xlu0 %2568, %v2451
        %v2570 = vpop.permute.xlu0 %2569
        %2573 = vset.pattern.permute.xlu0 0
        %2574 = vperm.xlu0 %2573, %v2452
        %v2575 = vpop.permute.xlu0 %2574
        %2578 = vset.pattern.permute.xlu0 0
        %2579 = vperm.xlu0 %2578, %v2453
        %v2580 = vpop.permute.xlu0 %2579
        %2583 = vset.pattern.permute.xlu0 0
        %2584 = vperm.xlu0 %2583, %v2454
        %v2585 = vpop.permute.xlu0 %2584
        %v2587 = vmul.f32 %v187, %v2530
        %v2588 = vmul.f32 %v188, %v2530
        %v2589 = vmul.f32 %v189, %v2535
        %v2590 = vmul.f32 %v190, %v2535
        %v2591 = vmul.f32 %v191, %v2540
        %v2592 = vmul.f32 %v192, %v2540
        %v2593 = vmul.f32 %v193, %v2545
        %v2594 = vmul.f32 %v194, %v2545
        %v2595 = vmul.f32 %v195, %v2550
        %v2596 = vmul.f32 %v196, %v2550
        %v2597 = vmul.f32 %v197, %v2555
        %v2598 = vmul.f32 %v198, %v2555
        %v2599 = vmul.f32 %v199, %v2560
        %v2600 = vmul.f32 %v200, %v2560
        %v2601 = vmul.f32 %v201, %v2565
        %v2602 = vmul.f32 %v202, %v2565
        %v2603 = vmul.f32 %v203, %v2570
        %v2604 = vmul.f32 %v204, %v2570
        %v2605 = vmul.f32 %v205, %v2575
        %v2606 = vmul.f32 %v206, %v2575
        %v2607 = vmul.f32 %v207, %v2580
        %v2608 = vmul.f32 %v208, %v2580
        %v2609 = vmul.f32 %v209, %v2585
        %v2610 = vmul.f32 %v210, %v2585
        %2612 = vset.pattern.permute.xlu0 1
        %2613 = vperm.xlu0 %2612, %v2515
        %v2614 = vpop.permute.xlu0 %2613
        %2617 = vset.pattern.permute.xlu0 1
        %2618 = vperm.xlu0 %2617, %v2516
        %v2619 = vpop.permute.xlu0 %2618
        %2622 = vset.pattern.permute.xlu0 1
        %2623 = vperm.xlu0 %2622, %v2517
        %v2624 = vpop.permute.xlu0 %2623
        %2627 = vset.pattern.permute.xlu0 1
        %2628 = vperm.xlu0 %2627, %v2518
        %v2629 = vpop.permute.xlu0 %2628
        %2632 = vset.pattern.permute.xlu0 1
        %2633 = vperm.xlu0 %2632, %v2519
        %v2634 = vpop.permute.xlu0 %2633
        %2637 = vset.pattern.permute.xlu0 1
        %2638 = vperm.xlu0 %2637, %v2520
        %v2639 = vpop.permute.xlu0 %2638
        %2642 = vset.pattern.permute.xlu0 1
        %2643 = vperm.xlu0 %2642, %v2521
        %v2644 = vpop.permute.xlu0 %2643
        %2647 = vset.pattern.permute.xlu0 1
        %2648 = vperm.xlu0 %2647, %v2522
        %v2649 = vpop.permute.xlu0 %2648
        %2652 = vset.pattern.permute.xlu0 1
        %2653 = vperm.xlu0 %2652, %v2523
        %v2654 = vpop.permute.xlu0 %2653
        %2657 = vset.pattern.permute.xlu0 1
        %2658 = vperm.xlu0 %2657, %v2524
        %v2659 = vpop.permute.xlu0 %2658
        %2662 = vset.pattern.permute.xlu0 1
        %2663 = vperm.xlu0 %2662, %v2525
        %v2664 = vpop.permute.xlu0 %2663
        %2667 = vset.pattern.permute.xlu0 1
        %2668 = vperm.xlu0 %2667, %v2526
        %v2669 = vpop.permute.xlu0 %2668
        %v2671 = vadd.f32 %v2587, %v2614
        %v2672 = vadd.f32 %v2588, %v2614
        %v2673 = vadd.f32 %v2589, %v2619
        %v2674 = vadd.f32 %v2590, %v2619
        %v2675 = vadd.f32 %v2591, %v2624
        %v2676 = vadd.f32 %v2592, %v2624
        %v2677 = vadd.f32 %v2593, %v2629
        %v2678 = vadd.f32 %v2594, %v2629
        %v2679 = vadd.f32 %v2595, %v2634
        %v2680 = vadd.f32 %v2596, %v2634
        %v2681 = vadd.f32 %v2597, %v2639
        %v2682 = vadd.f32 %v2598, %v2639
        %v2683 = vadd.f32 %v2599, %v2644
        %v2684 = vadd.f32 %v2600, %v2644
        %v2685 = vadd.f32 %v2601, %v2649
        %v2686 = vadd.f32 %v2602, %v2649
        %v2687 = vadd.f32 %v2603, %v2654
        %v2688 = vadd.f32 %v2604, %v2654
        %v2689 = vadd.f32 %v2605, %v2659
        %v2690 = vadd.f32 %v2606, %v2659
        %v2691 = vadd.f32 %v2607, %v2664
        %v2692 = vadd.f32 %v2608, %v2664
        %v2693 = vadd.f32 %v2609, %v2669
        %v2694 = vadd.f32 %v2610, %v2669
        %v2695 = vmax.f32 %v2671, 0.0
        %v2696 = vmax.f32 %v2672, 0.0
        %v2697 = vmax.f32 %v2673, 0.0
        %v2698 = vmax.f32 %v2674, 0.0
        %v2699 = vmax.f32 %v2675, 0.0
        %v2700 = vmax.f32 %v2676, 0.0
        %v2701 = vmax.f32 %v2677, 0.0
        %v2702 = vmax.f32 %v2678, 0.0
        %v2703 = vmax.f32 %v2679, 0.0
        %v2704 = vmax.f32 %v2680, 0.0
        %v2705 = vmax.f32 %v2681, 0.0
        %v2706 = vmax.f32 %v2682, 0.0
        %v2707 = vmax.f32 %v2683, 0.0
        %v2708 = vmax.f32 %v2684, 0.0
        %v2709 = vmax.f32 %v2685, 0.0
        %v2710 = vmax.f32 %v2686, 0.0
        %v2711 = vmax.f32 %v2687, 0.0
        %v2712 = vmax.f32 %v2688, 0.0
        %v2713 = vmax.f32 %v2689, 0.0
        %v2714 = vmax.f32 %v2690, 0.0
        %v2715 = vmax.f32 %v2691, 0.0
        %v2716 = vmax.f32 %v2692, 0.0
        %v2717 = vmax.f32 %v2693, 0.0
        %v2718 = vmax.f32 %v2694, 0.0
        %2719 = vst [vmem:[%s178] sm:$0xff] %v2695
        %2720 = vst [vmem:[%s178 + $0x8] sm:$0xff] %v2696
        %2721 = vst [vmem:[%s178 + $0x10] sm:$0xff] %v2697
        %2722 = vst [vmem:[%s178 + $0x18] sm:$0xff] %v2698
        %2723 = vst [vmem:[%s178 + $0x20] sm:$0xff] %v2699
        %2724 = vst [vmem:[%s178 + $0x28] sm:$0xff] %v2700
        %2725 = vst [vmem:[%s178 + $0x30] sm:$0xff] %v2701
        %2726 = vst [vmem:[%s178 + $0x38] sm:$0xff] %v2702
        %2727 = vst [vmem:[%s178 + $0x40] sm:$0xff] %v2703
        %2728 = vst [vmem:[%s178 + $0x48] sm:$0xff] %v2704
        %2729 = vst [vmem:[%s178 + $0x50] sm:$0xff] %v2705
        %2730 = vst [vmem:[%s178 + $0x58] sm:$0xff] %v2706
        %2731 = vst [vmem:[%s178 + $0x60] sm:$0xff] %v2707
        %2732 = vst [vmem:[%s178 + $0x68] sm:$0xff] %v2708
        %2733 = vst [vmem:[%s178 + $0x70] sm:$0xff] %v2709
        %2734 = vst [vmem:[%s178 + $0x78] sm:$0xff] %v2710
        %2735 = vst [vmem:[%s178 + $0x80] sm:$0xff] %v2711
        %2736 = vst [vmem:[%s178 + $0x88] sm:$0xff] %v2712
        %2737 = vst [vmem:[%s178 + $0x90] sm:$0xff] %v2713
        %2738 = vst [vmem:[%s178 + $0x98] sm:$0xff] %v2714
        %2739 = vst [vmem:[%s178 + $0xa0] sm:$0xff] %v2715
        %2740 = vst [vmem:[%s178 + $0xa8] sm:$0xff] %v2716
        %2741 = vst [vmem:[%s178 + $0xb0] sm:$0xff] %v2717
        %2742 = vst [vmem:[%s178 + $0xb8] sm:$0xff] %v2718
        %s2743 = sand.u32 %s79, 1
        %s2744 = scalar_lea.sflag [#allocation4], %s2743
        %s2745 = sand.u32 %s79, 1
        %s2746 = smul.addr %s2745, 192
        %s2747 = scalar_lea.vmem [#allocation5], %s2746
        // Predicated region
        $region33: #{tpu_custom_call.1} parent=27 // pred_check
          %p2748 = pneg %p89
        $region34: #{tpu_custom_call.1} parent=27 // pred_check_branch
          %2750 = sbr.rel (%p2748) target = $region36
        $region35: #{tpu_custom_call.1} parent=27 // pred_region
          %s2751 = smul.u32 12, %s19
          %s2753 = ssub.s32 3072, 3072
          %2754 = vsyncadd %s2744, %s2753
          %s2755 = smul.addr %s2751, 2
          %s2756 = smul.addr %s2755, 128
          %s2757 = scalar_lea.hbm %s2, %s2756
          %s2758 = sshll.u32 %s2747, 4
          %s2759 = int_to_ptr.vmem [resolvable:$true] %s2758
          %2764 = dma.vmem_to_hbm [thread:$0]  %s2759, 3072, %s2757, %s2744, 256, 256, 16
        $region36: #{tpu_custom_call.1} parent=27 // pred_fallthru
          _
      $region28: #{tpu_custom_call.1} parent=5 // pred_fallthru
        _
      %p2765 = scmp.le.s32.totalorder 2, %s14
      // Predicated region
      $region37: #{tpu_custom_call.1} parent=5 // pred_check
        %p2766 = pneg %p2765
      $region38: #{tpu_custom_call.1} parent=5 // pred_check_branch
        %2768 = sbr.rel (%p2766) target = $region40
      $region39: #{tpu_custom_call.1} parent=5 // pred_region
        %s2769 = ssub.s32 %s14, 2
        // Predicated region
        $region41: #{tpu_custom_call.1} parent=39 // pred_check
          %p2770 = pneg %p95
        $region42: #{tpu_custom_call.1} parent=39 // pred_check_branch
          %2772 = sbr.rel (%p2770) target = $region44
        $region43: #{tpu_custom_call.1} parent=39 // pred_region
          %s2773 = sand.u32 %s80, 1
          %s2774 = scalar_lea.sflag [#allocation4], %s2773
          %s2775 = sand.u32 %s80, 1
          %s2776 = smul.addr %s2775, 192
          %s2777 = scalar_lea.vmem [#allocation5], %s2776
          %2778 = dma.done %s2774, 3072
        $region44: #{tpu_custom_call.1} parent=39 // pred_fallthru
          _
      $region40: #{tpu_custom_call.1} parent=5 // pred_fallthru
        _
    $region6: #{tpu_custom_call.1} parent=1 // loop_footer
      %s18 = sadd.s32 1, %s14
    $region7: #{tpu_custom_call.1} parent=1 // loop_footer_branch
      %13 = sbr.rel target = $region3
    $region8: #{tpu_custom_call.1} parent=1 // loop_exit
      _
    %2779 = vsyncpa [#allocation3], 1
    %s2780 = scalar_lea.sflag [#allocation3], 1
    %2781 = vsyncpa %s2780, 1
    %2782 = vsyncpa [#allocation4], 1
    %s2783 = scalar_lea.sflag [#allocation4], 1
    %2784 = vsyncpa %s2783, 1

</llo_original>
